<compile_context>
chip_gen: v7x
topology: tpu7x:2x2x1
jax: 0.10.0
libtpu: 0.0.40
codegen_flags: <defaults>
</compile_context>

<pallas_src>
import functools

import jax
import jax.numpy as jnp
from jax.experimental import pallas as pl
from jax.experimental.pallas import tpu as pltpu


# ----------------------------------------------------------------------------- 
# Tunables (VMEM accounting)
# -----------------------------------------------------------------------------
_VMEM_BUDGET = 20 * 1024 * 1024   # target for double-buffered blocks + weights
_VMEM_LIMIT = 32 * 1024 * 1024    # scoped VMEM limit (v7x scoped default; OK on v5e/v6e)
_MAX_LANE_TILE = 32768            # upper bound on the flat spatial tile (was 4096)
_MAX_UNROLL = 32                  # bound on statically unrolled rows / images per step


# -----------------------------------------------------------------------------
# Kernels (BN scale already folded into the weight; shift passed separately)
# -----------------------------------------------------------------------------
def _skip_flat_kernel(x_ref, w_ref, b_ref, o_ref, *, bn):
    """stride-1 path.  Blocks:
         x_ref: (Bn, C_in, T)   w_ref: (TCO, C_in)   b_ref: (TCO, 1)
         o_ref: (Bn, TCO, T)    (T = lane-dense flattened H*W tile)
    """
    w = w_ref[...]
    b = b_ref[...]
    for i in range(bn):                       # static unroll over batched images
        acc = jnp.dot(w, x_ref[i], preferred_element_type=jnp.float32)
        o_ref[i] = jnp.maximum(acc + b, 0.0).astype(o_ref.dtype)


def _skip_strided_kernel(x_ref, w_ref, b_ref, sel_ref, o_ref, *, stride, bn, th):
    """stride-2 path with the spatial subsample fused in-kernel.  Blocks:
         x_ref  : (Bn, C_in, stride*TH, W)  raw (un-subsampled) input rows
         sel_ref: (W, Wo)                   0/1 even-column selection matrix
         o_ref  : (Bn, TCO, TH, Wo)
       Output row r uses the even input row `stride*r` (ref slice) and even
       columns via `@ sel` - both matmuls ride the otherwise-idle MXU.
    """
    w = w_ref[...]                            # (TCO, C_in)
    b = b_ref[...]                            # (TCO, 1)
    sel = sel_ref[...]                        # (W, Wo)
    for i in range(bn):
        for r in range(th):                   # static unroll over output rows
            xr = x_ref[i, :, stride * r, :]                               # (C_in, W)
            y = jnp.dot(w, xr, preferred_element_type=jnp.float32)       # (TCO, W)
            y = jnp.dot(y, sel, preferred_element_type=jnp.float32)      # (TCO, Wo)
            o_ref[i, :, r, :] = jnp.maximum(y + b, 0.0).astype(o_ref.dtype)


# -----------------------------------------------------------------------------
# Tiling heuristics
# -----------------------------------------------------------------------------
def _pick_co_tile(c_out, c_in):
    """Keep the whole folded weight resident whenever its double-buffered copy
    is small (<= 8 MiB); only tile C_out for very wide layers."""
    if 2 * c_out * c_in * 4 <= 8 * 1024 * 1024:
        return c_out
    for t in (512, 256, 128, 64):
        if c_out % t == 0:
            return t
    return c_out


# -----------------------------------------------------------------------------
# pallas_call wrappers
# -----------------------------------------------------------------------------
def _fused_conv_bn_relu_flat(x3, w_folded, shift):
    """stride-1 path: x3 (N, C_in, H*W) f32 -> (N, C_out, H*W)."""
    N, C_in, HW = x3.shape
    C_out = w_folded.shape[0]

    tco = _pick_co_tile(C_out, C_in)
    w_bytes = 2 * (tco * C_in + tco) * 4                      # double-buffered weight + shift
    avail = max(_VMEM_BUDGET - w_bytes, 2 * 4 * (C_in + tco) * 128)

    # Largest lane tile (multiple of 128) whose double-buffered in+out blocks fit.
    t = (avail // (2 * 4 * (C_in + tco)) // 128) * 128
    t = max(128, min(t, _MAX_LANE_TILE))
    if HW <= t:
        t = HW                                                # full row: no masking

    # Batch several images per grid step when a whole image fits one block
    # (contiguous in NCHW), amortizing the ~0.35us per-step overhead.
    bn = 1
    if t == HW:
        per_img = 2 * 4 * (C_in + tco) * HW
        bn = max(1, min(N, avail // max(per_img, 1), _MAX_UNROLL))
        if N > 1:
            bn = min(bn, -(-N // 2))          # keep >= 2 steps on the batch axis (v7x: 2 TCs)

    # v7x: if the grid would collapse to a single step, split the lane axis.
    if N == 1 and tco == C_out and t == HW and HW >= 256:
        t = max(128, (HW // 2) // 128 * 128)

    # j (C_out) is the innermost grid axis so the activation block is reused
    # across C_out tiles instead of being re-streamed from HBM.
    grid = (pl.cdiv(N, bn), pl.cdiv(HW, t), pl.cdiv(C_out, tco))

    return pl.pallas_call(
        functools.partial(_skip_flat_kernel, bn=bn),
        out_shape=jax.ShapeDtypeStruct((N, C_out, HW), x3.dtype),
        grid_spec=pltpu.PrefetchScalarGridSpec(
            num_scalar_prefetch=0,
            grid=grid,
            in_specs=[
                pl.BlockSpec((bn, C_in, t), lambda b, s, j: (b, 0, s)),
                pl.BlockSpec((tco, C_in), lambda b, s, j: (j, 0)),
                pl.BlockSpec((tco, 1), lambda b, s, j: (j, 0)),
            ],
            out_specs=pl.BlockSpec((bn, tco, t), lambda b, s, j: (b, j, s)),
        ),
        compiler_params=pltpu.CompilerParams(
            dimension_semantics=("parallel", "parallel", "parallel"),
            vmem_limit_bytes=_VMEM_LIMIT,
        ),
    )(x3, w_folded, shift)


def _fused_conv_bn_relu_strided(x, w_folded, shift, stride):
    """stride-2 path: x (N, C_in, H, W) -> (N, C_out, H//s, W//s), subsample fused."""
    N, C_in, H, W = x.shape
    C_out = w_folded.shape[0]
    Ho, Wo = H // stride, W // stride

    tco = _pick_co_tile(C_out, C_in)
    fixed = 2 * (tco * C_in + tco + W * Wo) * 4               # weight + shift + sel (dbl-buffered)
    avail = max(_VMEM_BUDGET - fixed, 1)

    per_row = (C_in * stride * W + tco * Wo) * 4              # input rows + output row, f32
    rows = max(1, avail // (2 * per_row))                     # double-buffered blocks
    rows = min(rows, _MAX_UNROLL)
    if rows >= Ho:
        th = Ho
    else:
        th = min(Ho, max(8, (rows // 8) * 8))                 # keep (8,128) divisibility

    bn = 1
    if th == Ho:                                              # whole image per step -> batch images
        per_img = 2 * per_row * Ho
        bn = max(1, min(N, avail // max(per_img, 1),
                        max(1, _MAX_UNROLL // max(th, 1))))
        if N > 1:
            bn = min(bn, -(-N // 2))          # keep >= 2 grid steps for v7x's two TensorCores

    # 0/1 matrix picking the even columns (offset 0, matching Conv2d stride=2).
    sel = (jnp.arange(W)[:, None] == stride * jnp.arange(Wo)[None, :]).astype(x.dtype)

    grid = (pl.cdiv(N, bn), pl.cdiv(Ho, th), pl.cdiv(C_out, tco))   # j innermost

    return pl.pallas_call(
        functools.partial(_skip_strided_kernel, stride=stride, bn=bn, th=th),
        out_shape=jax.ShapeDtypeStruct((N, C_out, Ho, Wo), x.dtype),
        grid_spec=pltpu.PrefetchScalarGridSpec(
            num_scalar_prefetch=0,
            grid=grid,
            in_specs=[
                pl.BlockSpec((bn, C_in, stride * th, W), lambda b, h, j: (b, 0, h, 0)),
                pl.BlockSpec((tco, C_in), lambda b, h, j: (j, 0)),
                pl.BlockSpec((tco, 1), lambda b, h, j: (j, 0)),
                pl.BlockSpec((W, Wo), lambda b, h, j: (0, 0)),
            ],
            out_specs=pl.BlockSpec((bn, tco, th, Wo), lambda b, h, j: (b, j, h, 0)),
        ),
        compiler_params=pltpu.CompilerParams(
            dimension_semantics=("parallel", "parallel", "parallel"),
            vmem_limit_bytes=_VMEM_LIMIT,
        ),
    )(x, w_folded, shift, sel)


# -----------------------------------------------------------------------------
# Skip module (JAX / Pallas)
# -----------------------------------------------------------------------------
class SkipPallas:
    def __init__(self, C_in, C_out, layer_id, stride=1, *, eps=1e-5):
        assert stride in (1, 2)
        assert C_out % 2 == 0, "C_out=%d" % C_out
        self.C_in = C_in
        self.C_out = C_out
        self.stride = stride
        self.layer_id = layer_id
        self.eps = eps
        self.has_conv = (stride == 2) or (C_in != C_out)

        if self.has_conv:
            # Deterministic parameter init (synthetic; no checkpoint load).
            key = jax.random.PRNGKey(layer_id + 1)
            kw, kg, kb, km, kv = jax.random.split(key, 5)
            bound = 1.0 / (C_in ** 0.5)        # fan_in of a 1x1 kernel
            self.conv_w = jax.random.uniform(
                kw, (C_out, C_in, 1, 1), jnp.float32, -bound, bound)
            # BatchNorm2d(C_out) parameters / running stats (inference mode).
            self.bn_gamma = 1.0 + 0.1 * jax.random.normal(kg, (C_out,), jnp.float32)
            self.bn_beta = 0.1 * jax.random.normal(kb, (C_out,), jnp.float32)
            self.bn_mean = 0.1 * jax.random.normal(km, (C_out,), jnp.float32)
            self.bn_var = jnp.abs(
                1.0 + 0.1 * jax.random.normal(kv, (C_out,), jnp.float32))

    def __call__(self, x):
        """x: (N, C_in, H, W) float32, NCHW (PyTorch convention)."""
        if not self.has_conv:
            return x                            # identity path

        N, C, H, W = x.shape
        assert C == self.C_in
        s = self.stride

        # Fold BN scale into the conv weight; only the shift goes to the kernel.
        scale = self.bn_gamma / jnp.sqrt(self.bn_var + self.eps)          # (C_out,)
        w_folded = self.conv_w.reshape(self.C_out, self.C_in) * scale[:, None]
        shift = (self.bn_beta - self.bn_mean * scale).reshape(self.C_out, 1)

        if s != 1 and H % s == 0 and W % s == 0:
            # Stride-2 subsample fused into the kernel (no extra HBM round trip).
            return _fused_conv_bn_relu_strided(x, w_folded, shift, s)

        if s != 1:
            # TODO(synk): extend the fused stride path to odd H/W (masked row/col
            # selection); fall back to a wrapper-side subsample for now.
            x = x[:, :, ::s, ::s]

        N, C, Ho, Wo = x.shape
        x3 = x.reshape(N, C, Ho * Wo)           # free reshape: spatial -> lane dim
        out3 = _fused_conv_bn_relu_flat(x3, w_folded, shift)
        return out3.reshape(N, self.C_out, Ho, Wo)


# -----------------------------------------------------------------------------
# Pure-JAX reference for verification
# -----------------------------------------------------------------------------
def _reference(mod: SkipPallas, x):
    if not mod.has_conv:
        return x
    s = mod.stride
    x_ds = x[:, :, ::s, ::s]
    w = mod.conv_w.reshape(mod.C_out, mod.C_in)
    y = jnp.einsum("nchw,oc->nohw", x_ds, w,
                   precision=jax.lax.Precision.HIGHEST)
    scale = mod.bn_gamma / jnp.sqrt(mod.bn_var + mod.eps)
    shift = mod.bn_beta - mod.bn_mean * scale
    y = y * scale[None, :, None, None] + shift[None, :, None, None]
    return jnp.maximum(y, 0.0)


def _check(name, out, ref, rtol=1e-2, atol=1e-2):
    assert out.shape == ref.shape, (name, out.shape, ref.shape)
    assert jnp.allclose(out, ref, rtol=rtol, atol=atol), "mismatch: " + name


if __name__ == "__main__":
    key = jax.random.PRNGKey(0)

    # --- 1: stride=2, fused in-kernel subsample (C_in=4 -> C_out=8) ----------
    N, C_in, H, W = 2, 4, 16, 16
    x = jax.random.normal(key, (N, C_in, H, W), jnp.float32)
    skip = SkipPallas(C_in, 8, layer_id=0, stride=2)
    out = jax.block_until_ready(skip(x))
    assert out.shape == (N, 8, H // 2, W // 2), out.shape
    _check("stride2 fused", out, _reference(skip, x))

    # --- 2: stride=1, larger channels (flat lane-dense MXU path) -------------
    x2 = jax.random.normal(jax.random.PRNGKey(1), (2, 32, 16, 16), jnp.float32)
    skip2 = SkipPallas(32, 64, layer_id=3, stride=1)
    out2 = jax.block_until_ready(skip2(x2))
    _check("stride1 mxu", out2, _reference(skip2, x2))

    # --- 3: identity (stride=1, C_in == C_out) --------------------------------
    skip_id = SkipPallas(C_in, C_in, layer_id=1, stride=1)
    out_id = jax.block_until_ready(skip_id(x))
    assert jnp.array_equal(out_id, x)

    # --- 4: small images, batched grid steps (Bn > 1) -------------------------
    x4 = jax.random.normal(jax.random.PRNGKey(2), (8, 4, 8, 8), jnp.float32)
    skip4 = SkipPallas(4, 8, layer_id=5, stride=1)
    out4 = jax.block_until_ready(skip4(x4))
    _check("batched small images", out4, _reference(skip4, x4))

    # --- 5: stride=2 with odd spatial dims (wrapper-slice fallback path) ------
    x5 = jax.random.normal(jax.random.PRNGKey(3), (2, 4, 15, 15), jnp.float32)
    skip5 = SkipPallas(4, 8, layer_id=7, stride=2)
    out5 = jax.block_until_ready(skip5(x5))
    _check("stride2 odd fallback", out5, _reference(skip5, x5))

    # --- 6: stride=2, multiple H tiles (partial boundary block) ---------------
    x6 = jax.random.normal(jax.random.PRNGKey(4), (1, 4, 144, 16), jnp.float32)
    skip6 = SkipPallas(4, 8, layer_id=9, stride=2)
    out6 = jax.block_until_ready(skip6(x6))
    _check("stride2 multi-tile", out6, _reference(skip6, x6))

    print("KERNEL_OK")
</pallas_src>

<mosaic_0001>
module attributes {stable_mosaic.version = 11 : i64} {
  func.func @_skip_strided_kernel(%arg0: i32, %arg1: i32, %arg2: i32, %arg3: memref<1x4x16x16xf32, #tpu.memory_space<vmem>>, %arg4: memref<8x4xf32, #tpu.memory_space<vmem>>, %arg5: memref<8x1xf32, #tpu.memory_space<vmem>>, %arg6: memref<16x8xf32, #tpu.memory_space<vmem>>, %arg7: memref<1x8x8x8xf32, #tpu.memory_space<vmem>>) attributes {dimension_semantics = [#tpu.dimension_semantics<parallel>, #tpu.dimension_semantics<parallel>, #tpu.dimension_semantics<parallel>], iteration_bounds = array<i64: 2, 1, 1>, scalar_prefetch = 0 : i64, scratch_operands = 0 : i64, tpu.core_type = #tpu.core_type<tc>, window_params = [{transform_indices = @transform_0, window_bounds = array<i64: 1, 4, 16, 16>}, {transform_indices = @transform_1, window_bounds = array<i64: 8, 4>}, {transform_indices = @transform_2, window_bounds = array<i64: 8, 1>}, {pipeline_mode = #tpu.pipeline_mode<synchronous>, transform_indices = @transform_3, window_bounds = array<i64: 16, 8>}, {transform_indices = @transform_4, window_bounds = array<i64: 1, 8, 8, 8>}]} {
    %c0 = arith.constant 0 : index
    %c0_0 = arith.constant 0 : index
    %0 = vector.load %arg4[%c0, %c0_0] : memref<8x4xf32, #tpu.memory_space<vmem>>, vector<8x4xf32>
    %c0_1 = arith.constant 0 : index
    %c0_2 = arith.constant 0 : index
    %1 = vector.load %arg5[%c0_1, %c0_2] : memref<8x1xf32, #tpu.memory_space<vmem>>, vector<8x1xf32>
    %c0_3 = arith.constant 0 : index
    %c0_4 = arith.constant 0 : index
    %2 = vector.load %arg6[%c0_3, %c0_4] : memref<16x8xf32, #tpu.memory_space<vmem>>, vector<16x8xf32>
    %c0_5 = arith.constant 0 : index
    %c0_6 = arith.constant 0 : index
    %c0_7 = arith.constant 0 : index
    %c0_8 = arith.constant 0 : index
    %3 = vector.load %arg3[%c0_5, %c0_6, %c0_7, %c0_8] : memref<1x4x16x16xf32, #tpu.memory_space<vmem>>, vector<1x4x1x16xf32>
    %4 = vector.shape_cast %3 : vector<1x4x1x16xf32> to vector<4x16xf32>
    %cst = arith.constant dense<0.000000e+00> : vector<8x16xf32>
    %5 = tpu.matmul %0, %4, %cst {dimension_numbers = #tpu.dot_dimension_numbers<[1], [0], [0], [1], [0, 0, 1, 1], [], []>} : vector<8x4xf32>, vector<4x16xf32>, vector<8x16xf32> -> vector<8x16xf32>
    %cst_9 = arith.constant dense<0.000000e+00> : vector<8x8xf32>
    %6 = tpu.matmul %5, %2, %cst_9 {dimension_numbers = #tpu.dot_dimension_numbers<[1], [0], [0], [1], [0, 0, 1, 1], [], []>} : vector<8x16xf32>, vector<16x8xf32>, vector<8x8xf32> -> vector<8x8xf32>
    %7 = vector.broadcast %1 : vector<8x1xf32> to vector<8x8xf32>
    %8 = arith.addf %6, %7 : vector<8x8xf32>
    %cst_10 = arith.constant 0.000000e+00 : f32
    %9 = vector.broadcast %cst_10 : f32 to vector<8x8xf32>
    %10 = arith.maximumf %8, %9 : vector<8x8xf32>
    %c0_11 = arith.constant 0 : index
    %c0_12 = arith.constant 0 : index
    %c0_13 = arith.constant 0 : index
    %c0_14 = arith.constant 0 : index
    %11 = vector.load %arg7[%c0_11, %c0_12, %c0_13, %c0_14] : memref<1x8x8x8xf32, #tpu.memory_space<vmem>>, vector<1x8x1x8xf32>
    %12 = vector.shape_cast %11 : vector<1x8x1x8xf32> to vector<8x8xf32>
    %13 = vector.shape_cast %10 : vector<8x8xf32> to vector<1x8x1x8xf32>
    tpu.vector_store %arg7[%c0_11, %c0_12, %c0_13, %c0_14], %13 {strides = array<i32>} : memref<1x8x8x8xf32, #tpu.memory_space<vmem>>, vector<1x8x1x8xf32>,
    %c0_15 = arith.constant 0 : index
    %c0_16 = arith.constant 0 : index
    %c2 = arith.constant 2 : index
    %c0_17 = arith.constant 0 : index
    %14 = vector.load %arg3[%c0_15, %c0_16, %c2, %c0_17] : memref<1x4x16x16xf32, #tpu.memory_space<vmem>>, vector<1x4x1x16xf32>
    %15 = vector.shape_cast %14 : vector<1x4x1x16xf32> to vector<4x16xf32>
    %cst_18 = arith.constant dense<0.000000e+00> : vector<8x16xf32>
    %16 = tpu.matmul %0, %15, %cst_18 {dimension_numbers = #tpu.dot_dimension_numbers<[1], [0], [0], [1], [0, 0, 1, 1], [], []>} : vector<8x4xf32>, vector<4x16xf32>, vector<8x16xf32> -> vector<8x16xf32>
    %cst_19 = arith.constant dense<0.000000e+00> : vector<8x8xf32>
    %17 = tpu.matmul %16, %2, %cst_19 {dimension_numbers = #tpu.dot_dimension_numbers<[1], [0], [0], [1], [0, 0, 1, 1], [], []>} : vector<8x16xf32>, vector<16x8xf32>, vector<8x8xf32> -> vector<8x8xf32>
    %18 = vector.broadcast %1 : vector<8x1xf32> to vector<8x8xf32>
    %19 = arith.addf %17, %18 : vector<8x8xf32>
    %cst_20 = arith.constant 0.000000e+00 : f32
    %20 = vector.broadcast %cst_20 : f32 to vector<8x8xf32>
    %21 = arith.maximumf %19, %20 : vector<8x8xf32>
    %c0_21 = arith.constant 0 : index
    %c0_22 = arith.constant 0 : index
    %c1 = arith.constant 1 : index
    %c0_23 = arith.constant 0 : index
    %22 = vector.load %arg7[%c0_21, %c0_22, %c1, %c0_23] : memref<1x8x8x8xf32, #tpu.memory_space<vmem>>, vector<1x8x1x8xf32>
    %23 = vector.shape_cast %22 : vector<1x8x1x8xf32> to vector<8x8xf32>
    %24 = vector.shape_cast %21 : vector<8x8xf32> to vector<1x8x1x8xf32>
    tpu.vector_store %arg7[%c0_21, %c0_22, %c1, %c0_23], %24 {strides = array<i32>} : memref<1x8x8x8xf32, #tpu.memory_space<vmem>>, vector<1x8x1x8xf32>,
    %c0_24 = arith.constant 0 : index
    %c0_25 = arith.constant 0 : index
    %c4 = arith.constant 4 : index
    %c0_26 = arith.constant 0 : index
    %25 = vector.load %arg3[%c0_24, %c0_25, %c4, %c0_26] : memref<1x4x16x16xf32, #tpu.memory_space<vmem>>, vector<1x4x1x16xf32>
    %26 = vector.shape_cast %25 : vector<1x4x1x16xf32> to vector<4x16xf32>
    %cst_27 = arith.constant dense<0.000000e+00> : vector<8x16xf32>
    %27 = tpu.matmul %0, %26, %cst_27 {dimension_numbers = #tpu.dot_dimension_numbers<[1], [0], [0], [1], [0, 0, 1, 1], [], []>} : vector<8x4xf32>, vector<4x16xf32>, vector<8x16xf32> -> vector<8x16xf32>
    %cst_28 = arith.constant dense<0.000000e+00> : vector<8x8xf32>
    %28 = tpu.matmul %27, %2, %cst_28 {dimension_numbers = #tpu.dot_dimension_numbers<[1], [0], [0], [1], [0, 0, 1, 1], [], []>} : vector<8x16xf32>, vector<16x8xf32>, vector<8x8xf32> -> vector<8x8xf32>
    %29 = vector.broadcast %1 : vector<8x1xf32> to vector<8x8xf32>
    %30 = arith.addf %28, %29 : vector<8x8xf32>
    %cst_29 = arith.constant 0.000000e+00 : f32
    %31 = vector.broadcast %cst_29 : f32 to vector<8x8xf32>
    %32 = arith.maximumf %30, %31 : vector<8x8xf32>
    %c0_30 = arith.constant 0 : index
    %c0_31 = arith.constant 0 : index
    %c2_32 = arith.constant 2 : index
    %c0_33 = arith.constant 0 : index
    %33 = vector.load %arg7[%c0_30, %c0_31, %c2_32, %c0_33] : memref<1x8x8x8xf32, #tpu.memory_space<vmem>>, vector<1x8x1x8xf32>
    %34 = vector.shape_cast %33 : vector<1x8x1x8xf32> to vector<8x8xf32>
    %35 = vector.shape_cast %32 : vector<8x8xf32> to vector<1x8x1x8xf32>
    tpu.vector_store %arg7[%c0_30, %c0_31, %c2_32, %c0_33], %35 {strides = array<i32>} : memref<1x8x8x8xf32, #tpu.memory_space<vmem>>, vector<1x8x1x8xf32>,
    %c0_34 = arith.constant 0 : index
    %c0_35 = arith.constant 0 : index
    %c6 = arith.constant 6 : index
    %c0_36 = arith.constant 0 : index
    %36 = vector.load %arg3[%c0_34, %c0_35, %c6, %c0_36] : memref<1x4x16x16xf32, #tpu.memory_space<vmem>>, vector<1x4x1x16xf32>
    %37 = vector.shape_cast %36 : vector<1x4x1x16xf32> to vector<4x16xf32>
    %cst_37 = arith.constant dense<0.000000e+00> : vector<8x16xf32>
    %38 = tpu.matmul %0, %37, %cst_37 {dimension_numbers = #tpu.dot_dimension_numbers<[1], [0], [0], [1], [0, 0, 1, 1], [], []>} : vector<8x4xf32>, vector<4x16xf32>, vector<8x16xf32> -> vector<8x16xf32>
    %cst_38 = arith.constant dense<0.000000e+00> : vector<8x8xf32>
    %39 = tpu.matmul %38, %2, %cst_38 {dimension_numbers = #tpu.dot_dimension_numbers<[1], [0], [0], [1], [0, 0, 1, 1], [], []>} : vector<8x16xf32>, vector<16x8xf32>, vector<8x8xf32> -> vector<8x8xf32>
    %40 = vector.broadcast %1 : vector<8x1xf32> to vector<8x8xf32>
    %41 = arith.addf %39, %40 : vector<8x8xf32>
    %cst_39 = arith.constant 0.000000e+00 : f32
    %42 = vector.broadcast %cst_39 : f32 to vector<8x8xf32>
    %43 = arith.maximumf %41, %42 : vector<8x8xf32>
    %c0_40 = arith.constant 0 : index
    %c0_41 = arith.constant 0 : index
    %c3 = arith.constant 3 : index
    %c0_42 = arith.constant 0 : index
    %44 = vector.load %arg7[%c0_40, %c0_41, %c3, %c0_42] : memref<1x8x8x8xf32, #tpu.memory_space<vmem>>, vector<1x8x1x8xf32>
    %45 = vector.shape_cast %44 : vector<1x8x1x8xf32> to vector<8x8xf32>
    %46 = vector.shape_cast %43 : vector<8x8xf32> to vector<1x8x1x8xf32>
    tpu.vector_store %arg7[%c0_40, %c0_41, %c3, %c0_42], %46 {strides = array<i32>} : memref<1x8x8x8xf32, #tpu.memory_space<vmem>>, vector<1x8x1x8xf32>,
    %c0_43 = arith.constant 0 : index
    %c0_44 = arith.constant 0 : index
    %c8 = arith.constant 8 : index
    %c0_45 = arith.constant 0 : index
    %47 = vector.load %arg3[%c0_43, %c0_44, %c8, %c0_45] : memref<1x4x16x16xf32, #tpu.memory_space<vmem>>, vector<1x4x1x16xf32>
    %48 = vector.shape_cast %47 : vector<1x4x1x16xf32> to vector<4x16xf32>
    %cst_46 = arith.constant dense<0.000000e+00> : vector<8x16xf32>
    %49 = tpu.matmul %0, %48, %cst_46 {dimension_numbers = #tpu.dot_dimension_numbers<[1], [0], [0], [1], [0, 0, 1, 1], [], []>} : vector<8x4xf32>, vector<4x16xf32>, vector<8x16xf32> -> vector<8x16xf32>
    %cst_47 = arith.constant dense<0.000000e+00> : vector<8x8xf32>
    %50 = tpu.matmul %49, %2, %cst_47 {dimension_numbers = #tpu.dot_dimension_numbers<[1], [0], [0], [1], [0, 0, 1, 1], [], []>} : vector<8x16xf32>, vector<16x8xf32>, vector<8x8xf32> -> vector<8x8xf32>
    %51 = vector.broadcast %1 : vector<8x1xf32> to vector<8x8xf32>
    %52 = arith.addf %50, %51 : vector<8x8xf32>
    %cst_48 = arith.constant 0.000000e+00 : f32
    %53 = vector.broadcast %cst_48 : f32 to vector<8x8xf32>
    %54 = arith.maximumf %52, %53 : vector<8x8xf32>
    %c0_49 = arith.constant 0 : index
    %c0_50 = arith.constant 0 : index
    %c4_51 = arith.constant 4 : index
    %c0_52 = arith.constant 0 : index
    %55 = vector.load %arg7[%c0_49, %c0_50, %c4_51, %c0_52] : memref<1x8x8x8xf32, #tpu.memory_space<vmem>>, vector<1x8x1x8xf32>
    %56 = vector.shape_cast %55 : vector<1x8x1x8xf32> to vector<8x8xf32>
    %57 = vector.shape_cast %54 : vector<8x8xf32> to vector<1x8x1x8xf32>
    tpu.vector_store %arg7[%c0_49, %c0_50, %c4_51, %c0_52], %57 {strides = array<i32>} : memref<1x8x8x8xf32, #tpu.memory_space<vmem>>, vector<1x8x1x8xf32>,
    %c0_53 = arith.constant 0 : index
    %c0_54 = arith.constant 0 : index
    %c10 = arith.constant 10 : index
    %c0_55 = arith.constant 0 : index
    %58 = vector.load %arg3[%c0_53, %c0_54, %c10, %c0_55] : memref<1x4x16x16xf32, #tpu.memory_space<vmem>>, vector<1x4x1x16xf32>
    %59 = vector.shape_cast %58 : vector<1x4x1x16xf32> to vector<4x16xf32>
    %cst_56 = arith.constant dense<0.000000e+00> : vector<8x16xf32>
    %60 = tpu.matmul %0, %59, %cst_56 {dimension_numbers = #tpu.dot_dimension_numbers<[1], [0], [0], [1], [0, 0, 1, 1], [], []>} : vector<8x4xf32>, vector<4x16xf32>, vector<8x16xf32> -> vector<8x16xf32>
    %cst_57 = arith.constant dense<0.000000e+00> : vector<8x8xf32>
    %61 = tpu.matmul %60, %2, %cst_57 {dimension_numbers = #tpu.dot_dimension_numbers<[1], [0], [0], [1], [0, 0, 1, 1], [], []>} : vector<8x16xf32>, vector<16x8xf32>, vector<8x8xf32> -> vector<8x8xf32>
    %62 = vector.broadcast %1 : vector<8x1xf32> to vector<8x8xf32>
    %63 = arith.addf %61, %62 : vector<8x8xf32>
    %cst_58 = arith.constant 0.000000e+00 : f32
    %64 = vector.broadcast %cst_58 : f32 to vector<8x8xf32>
    %65 = arith.maximumf %63, %64 : vector<8x8xf32>
    %c0_59 = arith.constant 0 : index
    %c0_60 = arith.constant 0 : index
    %c5 = arith.constant 5 : index
    %c0_61 = arith.constant 0 : index
    %66 = vector.load %arg7[%c0_59, %c0_60, %c5, %c0_61] : memref<1x8x8x8xf32, #tpu.memory_space<vmem>>, vector<1x8x1x8xf32>
    %67 = vector.shape_cast %66 : vector<1x8x1x8xf32> to vector<8x8xf32>
    %68 = vector.shape_cast %65 : vector<8x8xf32> to vector<1x8x1x8xf32>
    tpu.vector_store %arg7[%c0_59, %c0_60, %c5, %c0_61], %68 {strides = array<i32>} : memref<1x8x8x8xf32, #tpu.memory_space<vmem>>, vector<1x8x1x8xf32>,
    %c0_62 = arith.constant 0 : index
    %c0_63 = arith.constant 0 : index
    %c12 = arith.constant 12 : index
    %c0_64 = arith.constant 0 : index
    %69 = vector.load %arg3[%c0_62, %c0_63, %c12, %c0_64] : memref<1x4x16x16xf32, #tpu.memory_space<vmem>>, vector<1x4x1x16xf32>
    %70 = vector.shape_cast %69 : vector<1x4x1x16xf32> to vector<4x16xf32>
    %cst_65 = arith.constant dense<0.000000e+00> : vector<8x16xf32>
    %71 = tpu.matmul %0, %70, %cst_65 {dimension_numbers = #tpu.dot_dimension_numbers<[1], [0], [0], [1], [0, 0, 1, 1], [], []>} : vector<8x4xf32>, vector<4x16xf32>, vector<8x16xf32> -> vector<8x16xf32>
    %cst_66 = arith.constant dense<0.000000e+00> : vector<8x8xf32>
    %72 = tpu.matmul %71, %2, %cst_66 {dimension_numbers = #tpu.dot_dimension_numbers<[1], [0], [0], [1], [0, 0, 1, 1], [], []>} : vector<8x16xf32>, vector<16x8xf32>, vector<8x8xf32> -> vector<8x8xf32>
    %73 = vector.broadcast %1 : vector<8x1xf32> to vector<8x8xf32>
    %74 = arith.addf %72, %73 : vector<8x8xf32>
    %cst_67 = arith.constant 0.000000e+00 : f32
    %75 = vector.broadcast %cst_67 : f32 to vector<8x8xf32>
    %76 = arith.maximumf %74, %75 : vector<8x8xf32>
    %c0_68 = arith.constant 0 : index
    %c0_69 = arith.constant 0 : index
    %c6_70 = arith.constant 6 : index
    %c0_71 = arith.constant 0 : index
    %77 = vector.load %arg7[%c0_68, %c0_69, %c6_70, %c0_71] : memref<1x8x8x8xf32, #tpu.memory_space<vmem>>, vector<1x8x1x8xf32>
    %78 = vector.shape_cast %77 : vector<1x8x1x8xf32> to vector<8x8xf32>
    %79 = vector.shape_cast %76 : vector<8x8xf32> to vector<1x8x1x8xf32>
    tpu.vector_store %arg7[%c0_68, %c0_69, %c6_70, %c0_71], %79 {strides = array<i32>} : memref<1x8x8x8xf32, #tpu.memory_space<vmem>>, vector<1x8x1x8xf32>,
    %c0_72 = arith.constant 0 : index
    %c0_73 = arith.constant 0 : index
    %c14 = arith.constant 14 : index
    %c0_74 = arith.constant 0 : index
    %80 = vector.load %arg3[%c0_72, %c0_73, %c14, %c0_74] : memref<1x4x16x16xf32, #tpu.memory_space<vmem>>, vector<1x4x1x16xf32>
    %81 = vector.shape_cast %80 : vector<1x4x1x16xf32> to vector<4x16xf32>
    %cst_75 = arith.constant dense<0.000000e+00> : vector<8x16xf32>
    %82 = tpu.matmul %0, %81, %cst_75 {dimension_numbers = #tpu.dot_dimension_numbers<[1], [0], [0], [1], [0, 0, 1, 1], [], []>} : vector<8x4xf32>, vector<4x16xf32>, vector<8x16xf32> -> vector<8x16xf32>
    %cst_76 = arith.constant dense<0.000000e+00> : vector<8x8xf32>
    %83 = tpu.matmul %82, %2, %cst_76 {dimension_numbers = #tpu.dot_dimension_numbers<[1], [0], [0], [1], [0, 0, 1, 1], [], []>} : vector<8x16xf32>, vector<16x8xf32>, vector<8x8xf32> -> vector<8x8xf32>
    %84 = vector.broadcast %1 : vector<8x1xf32> to vector<8x8xf32>
    %85 = arith.addf %83, %84 : vector<8x8xf32>
    %cst_77 = arith.constant 0.000000e+00 : f32
    %86 = vector.broadcast %cst_77 : f32 to vector<8x8xf32>
    %87 = arith.maximumf %85, %86 : vector<8x8xf32>
    %c0_78 = arith.constant 0 : index
    %c0_79 = arith.constant 0 : index
    %c7 = arith.constant 7 : index
    %c0_80 = arith.constant 0 : index
    %88 = vector.load %arg7[%c0_78, %c0_79, %c7, %c0_80] : memref<1x8x8x8xf32, #tpu.memory_space<vmem>>, vector<1x8x1x8xf32>
    %89 = vector.shape_cast %88 : vector<1x8x1x8xf32> to vector<8x8xf32>
    %90 = vector.shape_cast %87 : vector<8x8xf32> to vector<1x8x1x8xf32>
    tpu.vector_store %arg7[%c0_78, %c0_79, %c7, %c0_80], %90 {strides = array<i32>} : memref<1x8x8x8xf32, #tpu.memory_space<vmem>>, vector<1x8x1x8xf32>,
    return
  }
  func.func @transform_0(%arg0: i32, %arg1: i32, %arg2: i32) -> (i32, i32, i32, i32) {
    %c0_i32 = arith.constant 0 : i32
    %c0_i32_0 = arith.constant 0 : i32
    %c0_i32_1 = arith.constant 0 : i32
    return %arg0, %c0_i32, %arg1, %c0_i32_0 : i32, i32, i32, i32
  }
  func.func @transform_1(%arg0: i32, %arg1: i32, %arg2: i32) -> (i32, i32) {
    %c0_i32 = arith.constant 0 : i32
    %c0_i32_0 = arith.constant 0 : i32
    return %arg2, %c0_i32 : i32, i32
  }
  func.func @transform_2(%arg0: i32, %arg1: i32, %arg2: i32) -> (i32, i32) {
    %c0_i32 = arith.constant 0 : i32
    %c0_i32_0 = arith.constant 0 : i32
    return %arg2, %c0_i32 : i32, i32
  }
  func.func @transform_3(%arg0: i32, %arg1: i32, %arg2: i32) -> (i32, i32) {
    %c0_i32 = arith.constant 0 : i32
    %c0_i32_0 = arith.constant 0 : i32
    %c0_i32_1 = arith.constant 0 : i32
    return %c0_i32, %c0_i32_0 : i32, i32
  }
  func.func @transform_4(%arg0: i32, %arg1: i32, %arg2: i32) -> (i32, i32, i32, i32) {
    %c0_i32 = arith.constant 0 : i32
    %c0_i32_0 = arith.constant 0 : i32
    return %arg0, %arg2, %arg1, %c0_i32 : i32, i32, i32, i32
  }
}

</mosaic_0001>

<llo_original>
// kernel: tpu_custom_call.1
$region0: #{tpu_custom_call.1}
  #allocation0 [shape = 'u32[]', space=smem, size = 0x4, offset = 0x4, fixed_abs, tag = 'smem constant byte address 0x4 - core index']
  #allocation1 [shape = 'u32[144,128]{1,0:T(1,128)}', space=vmem, size = 0x12000, scoped, tag = 'internal scratch']
  %s0 = inlined_call_operand.hbm [shape: f32[2,4,16,16], index: 0, kind: input, shape index: {}]
  %s1 = inlined_call_operand.vmem [shape: f32[8,4], index: 1, kind: input, shape index: {}]
  %s2 = inlined_call_operand.vmem [shape: f32[8,1], index: 2, kind: input, shape index: {}]
  %s3 = inlined_call_operand.vmem [shape: f32[16,8], index: 3, kind: input, shape index: {}]
  %s4 = inlined_call_operand.hbm [shape: f32[2,8,8,8], index: 4, kind: output, shape index: {}]
  %s5 = sld [smem:[#allocation0]]
  $region53: #{tpu_custom_call.1} parent=0
    _
  %s7 = ssub.s32 1, %s5
  %s8 = scalar_select 0, %s7, %s5
  $region1: #{tpu_custom_call.1} parent=0
    #allocation2 [shape = 'u8[65536]{0}', space=vmem, size = 0x10000, scoped, tag = 'input window, operand 0']
    #allocation3 [shape = 's32[2]{0}', space=sflag, size = 0x8, scoped, tag = 'scoped memory for tpu_custom_call.1']
    #allocation4 [shape = 's32[2]{0}', space=sflag, size = 0x8, scoped, tag = 'scoped memory for tpu_custom_call.1']
    #allocation5 [shape = 'u8[65536]{0}', space=vmem, size = 0x10000, scoped, tag = 'output window, operand 0']
    %9 = vsyncpa [#allocation3], 0
    %s10 = scalar_lea.sflag [#allocation3], 1
    %11 = vsyncpa %s10, 0
    %12 = vsyncpa [#allocation4], 0
    %s13 = scalar_lea.sflag [#allocation4], 1
    %14 = vsyncpa %s13, 0
    loop: start=0, step=1, limit=4
    $region2: #{tpu_custom_call.1} parent=1 // loop_pre_header
      _
    $region3: #{tpu_custom_call.1} parent=1 // loop_header
      %s16 = sphi 0, %s20
      %p17 = scmp.ge.s32.totalorder %s16, 4
      %s23 = sphi 0, %s42
      %s24 = sphi 0, %s38
      %s25 = sphi 0, %s34
      %s26 = sphi 0, %s23
      %s27 = sphi 0, %s24
      %s28 = sphi 0, %s25
      %s29 = sphi 0, %s26
      %s30 = sphi 0, %s27
      %s31 = sphi 0, %s28
      %s47 = sphi 0, %s49
      %s50 = sphi 0, %s47
      %s51 = sphi 0, %s50
      %s67 = sphi 0, %s51
      %s73 = sphi 0, %s75
      %s76 = sphi 0, %s73
      %s77 = sphi 0, %s76
      %s93 = sphi 0, %s77
      %s99 = sphi 0, %s101
      %s102 = sphi 0, %s99
      %s103 = sphi 0, %s102
      %s119 = sphi 0, %s103
      %s123 = sphi 0, %s123
      %s125 = sphi 0, %s123
      %s126 = sphi 0, %s125
      %s140 = sphi 0, %s126
      %s150 = sphi 0, %s152
      %s153 = sphi 0, %s150
      %s154 = sphi 0, %s153
      %s170 = sphi 0, %s154
    $region4: #{tpu_custom_call.1} parent=1 // loop_header_branch
      %19 = sbr.rel (%p17) target = $region8
    $region5: #{tpu_custom_call.1} parent=1 // loop_body
      %s21 = ssub.s32 %s16, 1
      %s22 = ssub.s32 %s16, 2
      %s32 = sadd.s32 1, %s25
      %p33 = scmp.ge.s32.totalorder %s32, 1
      %s34 = scalar_select %p33, 0, %s32
      %s35 = sadd.s32 1, %s24
      %s36 = scalar_select %p33, %s35, %s24
      %p37 = scmp.ge.s32.totalorder %s36, 1
      %s38 = scalar_select %p37, 0, %s36
      %s39 = sadd.s32 1, %s23
      %s40 = scalar_select %p37, %s39, %s23
      %p41 = scmp.ge.s32.totalorder %s40, 2
      %s42 = scalar_select %p41, 0, %s40
      %s43 = ssub.s32 %s23, %s42
      %s44 = ssub.s32 %s24, %s38
      %s45 = sor.u32 %s43, %s44
      %p46 = scmp.eq.s32.totalorder %s45, 0
      %s48 = sadd.s32 %s47, 1
      %s49 = scalar_select %p46, %s47, %s48
      %p52 = pneg %p46
      %p53 = scmp.eq.s32.totalorder %s16, 1
      %p54 = por %p52, %p53
      %p55 = scmp.ne.s32.totalorder %s47, %s50
      %p56 = scmp.eq.s32.totalorder %s16, 0
      %p57 = por %p55, %p56
      %p58 = scmp.ne.s32.totalorder %s47, %s50
      %p59 = scmp.eq.s32.totalorder %s21, 1
      %p60 = por %p58, %p59
      %p61 = scmp.ne.s32.totalorder %s50, %s51
      %p62 = scmp.eq.s32.totalorder %s21, 0
      %p63 = por %p61, %p62
      %p64 = scmp.ne.s32.totalorder %s50, %s51
      %p65 = scmp.eq.s32.totalorder %s22, 1
      %p66 = por %p64, %p65
      %p68 = scmp.ne.s32.totalorder %s51, %s67
      %p69 = scmp.eq.s32.totalorder %s22, 0
      %p70 = por %p68, %p69
      %s71 = ssub.s32 %s25, %s34
      %p72 = scmp.eq.s32.totalorder %s71, 0
      %s74 = sadd.s32 %s73, 1
      %s75 = scalar_select %p72, %s73, %s74
      %p78 = pneg %p72
      %p79 = scmp.eq.s32.totalorder %s16, 1
      %p80 = por %p78, %p79
      %p81 = scmp.ne.s32.totalorder %s73, %s76
      %p82 = scmp.eq.s32.totalorder %s16, 0
      %p83 = por %p81, %p82
      %p84 = scmp.ne.s32.totalorder %s73, %s76
      %p85 = scmp.eq.s32.totalorder %s21, 1
      %p86 = por %p84, %p85
      %p87 = scmp.ne.s32.totalorder %s76, %s77
      %p88 = scmp.eq.s32.totalorder %s21, 0
      %p89 = por %p87, %p88
      %p90 = scmp.ne.s32.totalorder %s76, %s77
      %p91 = scmp.eq.s32.totalorder %s22, 1
      %p92 = por %p90, %p91
      %p94 = scmp.ne.s32.totalorder %s77, %s93
      %p95 = scmp.eq.s32.totalorder %s22, 0
      %p96 = por %p94, %p95
      %s97 = ssub.s32 %s25, %s34
      %p98 = scmp.eq.s32.totalorder %s97, 0
      %s100 = sadd.s32 %s99, 1
      %s101 = scalar_select %p98, %s99, %s100
      %p104 = pneg %p98
      %p105 = scmp.eq.s32.totalorder %s16, 1
      %p106 = por %p104, %p105
      %p107 = scmp.ne.s32.totalorder %s99, %s102
      %p108 = scmp.eq.s32.totalorder %s16, 0
      %p109 = por %p107, %p108
      %p110 = scmp.ne.s32.totalorder %s99, %s102
      %p111 = scmp.eq.s32.totalorder %s21, 1
      %p112 = por %p110, %p111
      %p113 = scmp.ne.s32.totalorder %s102, %s103
      %p114 = scmp.eq.s32.totalorder %s21, 0
      %p115 = por %p113, %p114
      %p116 = scmp.ne.s32.totalorder %s102, %s103
      %p117 = scmp.eq.s32.totalorder %s22, 1
      %p118 = por %p116, %p117
      %p120 = scmp.ne.s32.totalorder %s103, %s119
      %p121 = scmp.eq.s32.totalorder %s22, 0
      %p122 = por %p120, %p121
      %s124 = sadd.s32 %s123, 1
      %p127 = scmp.eq.s32.totalorder %s16, 1
      %p128 = scmp.ne.s32.totalorder %s123, %s125
      %p129 = scmp.eq.s32.totalorder %s16, 0
      %p130 = por %p128, %p129
      %p131 = scmp.ne.s32.totalorder %s123, %s125
      %p132 = scmp.eq.s32.totalorder %s21, 1
      %p133 = por %p131, %p132
      %p134 = scmp.ne.s32.totalorder %s125, %s126
      %p135 = scmp.eq.s32.totalorder %s21, 0
      %p136 = por %p134, %p135
      %p137 = scmp.ne.s32.totalorder %s125, %s126
      %p138 = scmp.eq.s32.totalorder %s22, 1
      %p139 = por %p137, %p138
      %p141 = scmp.ne.s32.totalorder %s126, %s140
      %p142 = scmp.eq.s32.totalorder %s22, 0
      %p143 = por %p141, %p142
      %s144 = ssub.s32 %s23, %s42
      %s145 = ssub.s32 %s25, %s34
      %s146 = sor.u32 %s144, %s145
      %s147 = ssub.s32 %s24, %s38
      %s148 = sor.u32 %s146, %s147
      %p149 = scmp.eq.s32.totalorder %s148, 0
      %s151 = sadd.s32 %s150, 1
      %s152 = scalar_select %p149, %s150, %s151
      %p155 = pneg %p149
      %p156 = scmp.eq.s32.totalorder %s16, 1
      %p157 = por %p155, %p156
      %p158 = scmp.ne.s32.totalorder %s150, %s153
      %p159 = scmp.eq.s32.totalorder %s16, 0
      %p160 = por %p158, %p159
      %p161 = scmp.ne.s32.totalorder %s150, %s153
      %p162 = scmp.eq.s32.totalorder %s21, 1
      %p163 = por %p161, %p162
      %p164 = scmp.ne.s32.totalorder %s153, %s154
      %p165 = scmp.eq.s32.totalorder %s21, 0
      %p166 = por %p164, %p165
      %p167 = scmp.ne.s32.totalorder %s153, %s154
      %p168 = scmp.eq.s32.totalorder %s22, 1
      %p169 = por %p167, %p168
      %p171 = scmp.ne.s32.totalorder %s154, %s170
      %p172 = scmp.eq.s32.totalorder %s22, 0
      %p173 = por %p171, %p172
      %p174 = scmp.le.s32.totalorder 1, %s16
      %p175 = scmp.lt.s32.totalorder %s16, 3
      %p176 = pnand %p174, %p175
      %p177 = pneg %p176
      // Predicated region
      $region9: #{tpu_custom_call.1} parent=5 // pred_check
        _
      $region10: #{tpu_custom_call.1} parent=5 // pred_check_branch
        %179 = sbr.rel (%p176) target = $region12
      $region11: #{tpu_custom_call.1} parent=5 // pred_region
        %s180 = ssub.s32 %s16, 1
        // Predicated region
        $region13: #{tpu_custom_call.1} parent=11 // pred_check
          %p181 = pneg %p89
        $region14: #{tpu_custom_call.1} parent=11 // pred_check_branch
          %183 = sbr.rel (%p181) target = $region16
        $region15: #{tpu_custom_call.1} parent=11 // pred_region
          %p184 = scmp.lt.s32.totalorder %s28, 0
          %s185 = scalar_select %p184, %s28, 0
          %s186 = smul.addr %s185, 8
          %s187 = scalar_lea.vmem %s1, %s186
        $region16: #{tpu_custom_call.1} parent=11 // pred_fallthru
          _
        // Predicated region
        $region17: #{tpu_custom_call.1} parent=11 // pred_check
          %p188 = pneg %p115
        $region18: #{tpu_custom_call.1} parent=11 // pred_check_branch
          %190 = sbr.rel (%p188) target = $region20
        $region19: #{tpu_custom_call.1} parent=11 // pred_region
          %p191 = scmp.lt.s32.totalorder %s28, 0
          %s192 = scalar_select %p191, %s28, 0
          %s193 = smul.addr %s192, 8
          %s194 = scalar_lea.vmem %s2, %s193
        $region20: #{tpu_custom_call.1} parent=11 // pred_fallthru
          _
        // Predicated region
        $region21: #{tpu_custom_call.1} parent=11 // pred_check
          %p195 = pneg %p136
        $region22: #{tpu_custom_call.1} parent=11 // pred_check_branch
          %197 = sbr.rel (%p195) target = $region24
        $region23: #{tpu_custom_call.1} parent=11 // pred_region
          _
        $region24: #{tpu_custom_call.1} parent=11 // pred_fallthru
          _
      $region12: #{tpu_custom_call.1} parent=5 // pred_fallthru
        _
      %p198 = scmp.lt.s32.totalorder %s16, 2
      // Predicated region
      $region25: #{tpu_custom_call.1} parent=5 // pred_check
        %p199 = pneg %p198
      $region26: #{tpu_custom_call.1} parent=5 // pred_check_branch
        %201 = sbr.rel (%p199) target = $region28
      $region27: #{tpu_custom_call.1} parent=5 // pred_region
        // Predicated region
        $region29: #{tpu_custom_call.1} parent=27 // pred_check
          %p202 = pneg %p57
        $region30: #{tpu_custom_call.1} parent=27 // pred_check_branch
          %204 = sbr.rel (%p202) target = $region32
        $region31: #{tpu_custom_call.1} parent=27 // pred_region
          %s205 = sand.u32 %s47, 1
          %s206 = scalar_lea.sflag [#allocation3], %s205
          %s207 = sand.u32 %s47, 1
          %s208 = smul.addr %s207, 64
          %s209 = scalar_lea.vmem [#allocation2], %s208
          %s210 = smul.u32 2, %s24
          %s212 = ssub.s32 1024, 1024
          %213 = vsyncadd %s206, %s212
          %s214 = smul.addr %s23, 8
          %s215 = sadd.s32 %s210, %s214
          %s216 = smul.addr %s215, 128
          %s217 = scalar_lea.hbm %s0, %s216
          %s218 = sshll.u32 %s209, 4
          %s219 = int_to_ptr.vmem [resolvable:$true] %s218
          %224 = dma.hbm_to_vmem [thread:$0]  %s217, 1024, %s219, %s206, 128, 128, 8
        $region32: #{tpu_custom_call.1} parent=27 // pred_fallthru
          _
      $region28: #{tpu_custom_call.1} parent=5 // pred_fallthru
        _
      %p225 = scmp.le.s32.totalorder 1, %s16
      %p226 = scmp.lt.s32.totalorder %s16, 3
      %p227 = pnand %p225, %p226
      %p228 = pneg %p227
      // Predicated region
      $region33: #{tpu_custom_call.1} parent=5 // pred_check
        _
      $region34: #{tpu_custom_call.1} parent=5 // pred_check_branch
        %230 = sbr.rel (%p227) target = $region36
      $region35: #{tpu_custom_call.1} parent=5 // pred_region
        %s231 = ssub.s32 %s16, 1
        %s232 = sand.u32 %s50, 1
        %s233 = scalar_lea.sflag [#allocation3], %s232
        %s234 = sand.u32 %s50, 1
        %s235 = smul.addr %s234, 64
        %s236 = scalar_lea.vmem [#allocation2], %s235
        // Predicated region
        $region37: #{tpu_custom_call.1} parent=35 // pred_check
          %p237 = pneg %p63
        $region38: #{tpu_custom_call.1} parent=35 // pred_check_branch
          %239 = sbr.rel (%p237) target = $region40
        $region39: #{tpu_custom_call.1} parent=35 // pred_region
          %240 = dma.done %s233, 1024
        $region40: #{tpu_custom_call.1} parent=35 // pred_fallthru
          _
        %s241 = sand.u32 %s50, 1
        %s242 = scalar_lea.sflag [#allocation3], %s241
        %s243 = sand.u32 %s50, 1
        %s244 = smul.addr %s243, 64
        %s245 = scalar_lea.vmem [#allocation2], %s244
        %p246 = pneg %p63
        %p247 = pneg %p60
        %p248 = scmp.lt.s32.totalorder %s28, 0
        %s249 = scalar_select %p248, %s28, 0
        %s250 = smul.addr %s249, 8
        %s251 = scalar_lea.vmem %s1, %s250
        %p252 = pneg %p89
        %p253 = pneg %p86
        %p254 = scmp.lt.s32.totalorder %s28, 0
        %s255 = scalar_select %p254, %s28, 0
        %s256 = smul.addr %s255, 8
        %s257 = scalar_lea.vmem %s2, %s256
        %p258 = pneg %p115
        %p259 = pneg %p112
        %p260 = pneg %p136
        %p261 = pneg %p133
        %p262 = pneg %p166
        %p263 = pneg %p163
        %s264 = sand.u32 %s153, 1
        %s265 = scalar_lea.sflag [#allocation4], %s264
        %s266 = sand.u32 %s153, 1
        %s267 = smul.addr %s266, 64
        %s268 = scalar_lea.vmem [#allocation5], %s267
        %s269 = smul.u32 2, %s27
        %p270 = scmp.lt.s32.totalorder %s28, 0
        %s271 = scalar_select %p270, %s28, 0
        %s272 = smul.addr %s271, 8
        %s273 = scalar_lea.vmem %s1, %s272
        %p274 = scmp.lt.s32.totalorder %s28, 0
        %s275 = scalar_select %p274, %s28, 0
        %s276 = smul.addr %s275, 8
        %s277 = scalar_lea.vmem %s2, %s276
        %s278 = smul.u32 8, %s28
        %v279 = vld [vmem:[%s273] sm:$0xff]
        %v280 = vld [vmem:[%s277] sm:$0xff]
        %v281 = vld [vmem:[%s3] sm:$0xff]
        %v282 = vld [vmem:[%s3 + $0x8] sm:$0xff]
        %v283 = vld [vmem:[%s236] sm:$0x1]
        %v284 = vld [vmem:[%s236 + $0x10] sm:$0x1]
        %v285 = vld [vmem:[%s236 + $0x20] sm:$0x1]
        %v286 = vld [vmem:[%s236 + $0x30] sm:$0x1]
        %v291 = vrot.slane %v284, 7
        %vm292 = vcmask 1041409
        %v293 = vsel %vm292, %v291, %v283
        %v294 = vrot.slane %v285, 6
        %vm295 = vcmask 1042434
        %v296 = vsel %vm295, %v294, %v293
        %v297 = vrot.slane %v286, 5
        %vm298 = vcmask 1043459
        %v299 = vsel %vm298, %v297, %v296
        %vm300 = vcmask 31744
        %v302 = vsel %vm300, %v279, 0
        %vm304 = vcmask 1043456
        %v305 = vsel %vm304, %v299, 0
        %307 = vmatprep.subr.mxu0 0.0
        %308 = vmatpush1.msra.mxu0 %v305
        %309 = vmatprep.subr.mxu0 0.0
        %310 = vmatpush1.msra.mxu0 0.0
        %311 = vmatprep.subr.mxu0 0.0
        %312 = vmatpush1.msra.mxu0 0.0
        %313 = vmatprep.subr.mxu0 0.0
        %314 = vmatpush1.msra.mxu0 0.0
        %315 = vmatprep.subr.mxu0 0.0
        %316 = vmatpush1.msra.mxu0 0.0
        %317 = vmatprep.subr.mxu0 0.0
        %318 = vmatpush1.msra.mxu0 0.0
        %319 = vmatprep.subr.mxu0 0.0
        %320 = vmatpush1.msra.mxu0 0.0
        %321 = vmatprep.subr.mxu0 0.0
        %322 = vmatpush1.msra.mxu0 0.0
        %323 = vmatprep.subr.mxu0 0.0
        %324 = vmatpush1.msra.mxu0 0.0
        %325 = vmatprep.subr.mxu0 0.0
        %326 = vmatpush1.msra.mxu0 0.0
        %327 = vmatprep.subr.mxu0 0.0
        %328 = vmatpush1.msra.mxu0 0.0
        %329 = vmatprep.subr.mxu0 0.0
        %330 = vmatpush1.msra.mxu0 0.0
        %331 = vmatprep.subr.mxu0 0.0
        %332 = vmatpush1.msra.mxu0 0.0
        %333 = vmatprep.subr.mxu0 0.0
        %334 = vmatpush1.msra.mxu0 0.0
        %335 = vmatprep.subr.mxu0 0.0
        %336 = vmatpush1.msra.mxu0 0.0
        %337 = vmatprep.subr.mxu0 0.0
        %338 = vmatpush1.msra.mxu0 0.0
        %339 = vmatprep.subr.mxu0 0.0
        %340 = vmatpush1.msra.mxu0 0.0
        %341 = vmatprep.subr.mxu0 0.0
        %342 = vmatpush1.msra.mxu0 0.0
        %343 = vmatprep.subr.mxu0 0.0
        %344 = vmatpush1.msra.mxu0 0.0
        %345 = vmatprep.subr.mxu0 0.0
        %346 = vmatpush1.msra.mxu0 0.0
        %347 = vmatprep.subr.mxu0 0.0
        %348 = vmatpush1.msra.mxu0 0.0
        %349 = vmatprep.subr.mxu0 0.0
        %350 = vmatpush1.msra.mxu0 0.0
        %351 = vmatprep.subr.mxu0 0.0
        %352 = vmatpush1.msra.mxu0 0.0
        %353 = vmatprep.subr.mxu0 0.0
        %354 = vmatpush1.msra.mxu0 0.0
        %355 = vmatprep.subr.mxu0 0.0
        %356 = vmatpush1.msra.mxu0 0.0
        %357 = vmatprep.subr.mxu0 0.0
        %358 = vmatpush1.msra.mxu0 0.0
        %359 = vmatprep.subr.mxu0 0.0
        %360 = vmatpush1.msra.mxu0 0.0
        %361 = vmatprep.subr.mxu0 0.0
        %362 = vmatpush1.msra.mxu0 0.0
        %363 = vmatprep.subr.mxu0 0.0
        %364 = vmatpush1.msra.mxu0 0.0
        %365 = vmatprep.subr.mxu0 0.0
        %366 = vmatpush1.msra.mxu0 0.0
        %367 = vmatprep.subr.mxu0 0.0
        %368 = vmatpush1.msra.mxu0 0.0
        %369 = vmatprep.subr.mxu0 0.0
        %370 = vmatpush1.msra.mxu0 0.0
        %371 = vmatprep.mubr.f32.mxu0 0.0
        %372 = vmatmul.mubr.f32.gmra.mrb[0].mxu0 %v302
        %v373 = vpop.f32.mrb[0].mxu0
        %v374 = vadd.f32 0.0, %v373
        %v375 = vpop.f32.mrb[0].mxu0
        %376 = vdwg.mxu0
        %378 = vset.pattern.permute.xlu0 0
        %379 = vperm.xlu0 %378, %v280
        %v380 = vpop.permute.xlu0 %379
        %vm382 = vcmask 130048
        %v384 = vsel %vm382, %v374, 0
        %386 = vmatprep.subr.mxu0 0.0
        %387 = vmatpush1.msra.mxu0 %v281
        %388 = vmatprep.subr.mxu0 0.0
        %389 = vmatpush1.msra.mxu0 %v282
        %390 = vmatprep.subr.mxu0 0.0
        %391 = vmatpush1.msra.mxu0 0.0
        %392 = vmatprep.subr.mxu0 0.0
        %393 = vmatpush1.msra.mxu0 0.0
        %394 = vmatprep.subr.mxu0 0.0
        %395 = vmatpush1.msra.mxu0 0.0
        %396 = vmatprep.subr.mxu0 0.0
        %397 = vmatpush1.msra.mxu0 0.0
        %398 = vmatprep.subr.mxu0 0.0
        %399 = vmatpush1.msra.mxu0 0.0
        %400 = vmatprep.subr.mxu0 0.0
        %401 = vmatpush1.msra.mxu0 0.0
        %402 = vmatprep.subr.mxu0 0.0
        %403 = vmatpush1.msra.mxu0 0.0
        %404 = vmatprep.subr.mxu0 0.0
        %405 = vmatpush1.msra.mxu0 0.0
        %406 = vmatprep.subr.mxu0 0.0
        %407 = vmatpush1.msra.mxu0 0.0
        %408 = vmatprep.subr.mxu0 0.0
        %409 = vmatpush1.msra.mxu0 0.0
        %410 = vmatprep.subr.mxu0 0.0
        %411 = vmatpush1.msra.mxu0 0.0
        %412 = vmatprep.subr.mxu0 0.0
        %413 = vmatpush1.msra.mxu0 0.0
        %414 = vmatprep.subr.mxu0 0.0
        %415 = vmatpush1.msra.mxu0 0.0
        %416 = vmatprep.subr.mxu0 0.0
        %417 = vmatpush1.msra.mxu0 0.0
        %418 = vmatprep.subr.mxu0 0.0
        %419 = vmatpush1.msra.mxu0 0.0
        %420 = vmatprep.subr.mxu0 0.0
        %421 = vmatpush1.msra.mxu0 0.0
        %422 = vmatprep.subr.mxu0 0.0
        %423 = vmatpush1.msra.mxu0 0.0
        %424 = vmatprep.subr.mxu0 0.0
        %425 = vmatpush1.msra.mxu0 0.0
        %426 = vmatprep.subr.mxu0 0.0
        %427 = vmatpush1.msra.mxu0 0.0
        %428 = vmatprep.subr.mxu0 0.0
        %429 = vmatpush1.msra.mxu0 0.0
        %430 = vmatprep.subr.mxu0 0.0
        %431 = vmatpush1.msra.mxu0 0.0
        %432 = vmatprep.subr.mxu0 0.0
        %433 = vmatpush1.msra.mxu0 0.0
        %434 = vmatprep.subr.mxu0 0.0
        %435 = vmatpush1.msra.mxu0 0.0
        %436 = vmatprep.subr.mxu0 0.0
        %437 = vmatpush1.msra.mxu0 0.0
        %438 = vmatprep.subr.mxu0 0.0
        %439 = vmatpush1.msra.mxu0 0.0
        %440 = vmatprep.subr.mxu0 0.0
        %441 = vmatpush1.msra.mxu0 0.0
        %442 = vmatprep.subr.mxu0 0.0
        %443 = vmatpush1.msra.mxu0 0.0
        %444 = vmatprep.subr.mxu0 0.0
        %445 = vmatpush1.msra.mxu0 0.0
        %446 = vmatprep.subr.mxu0 0.0
        %447 = vmatpush1.msra.mxu0 0.0
        %448 = vmatprep.subr.mxu0 0.0
        %449 = vmatpush1.msra.mxu0 0.0
        %450 = vmatprep.mubr.f32.mxu0 0.0
        %451 = vmatmul.mubr.f32.gmra.mrb[0].mxu0 %v384
        %v452 = vpop.f32.mrb[0].mxu0
        %v453 = vadd.f32 %v380, %v452
        %v454 = vpop.f32.mrb[0].mxu0
        %455 = vdwg.mxu0
        %v456 = vmax.f32 %v453, 0.0
        %v458 = vcombine.high %v456, %v456
        %v460 = vunpack.c.l.s4 1966171168
        %v461 = vunpack.c.0.s8 %v460
        %v462 = vlaneseq
        %v463 = vshrl.u32 %v462, 7
        %v464 = vsub.s32 %v461, %v463
        %v465 = vrot.slane %v456, %v464
        %v467 = vunpack.c.l.s4 1966171168
        %v468 = vunpack.c.0.s8 %v467
        %v469 = vlaneseq
        %v470 = vshrl.u32 %v469, 7
        %v471 = vsub.s32 %v468, %v470
        %v472 = vrot.slane %v458, %v471
        %v473 = vcombine.high %v465, %v465
        %v474 = vcombine.high %v472, %v472
        %v476 = vunpack.c.l.s4 1966171168
        %v477 = vunpack.c.0.s8 %v476
        %v478 = vlaneseq
        %v479 = vshrl.u32 %v478, 7
        %v480 = vsub.s32 %v477, %v479
        %v481 = vrot.slane %v465, %v480
        %v483 = vunpack.c.l.s4 1966171168
        %v484 = vunpack.c.0.s8 %v483
        %v485 = vlaneseq
        %v486 = vshrl.u32 %v485, 7
        %v487 = vsub.s32 %v484, %v486
        %v488 = vrot.slane %v472, %v487
        %v490 = vunpack.c.l.s4 1966171168
        %v491 = vunpack.c.0.s8 %v490
        %v492 = vlaneseq
        %v493 = vshrl.u32 %v492, 7
        %v494 = vsub.s32 %v491, %v493
        %v495 = vrot.slane %v473, %v494
        %v497 = vunpack.c.l.s4 1966171168
        %v498 = vunpack.c.0.s8 %v497
        %v499 = vlaneseq
        %v500 = vshrl.u32 %v499, 7
        %v501 = vsub.s32 %v498, %v500
        %v502 = vrot.slane %v474, %v501
        %v503 = vcombine.high %v481, %v481
        %v504 = vcombine.high %v488, %v488
        %v505 = vcombine.high %v495, %v495
        %v506 = vcombine.high %v502, %v502
        %vm515 = vcmask 57344
        %516 = vst.msk [vmem:[%s268] sm:$0x1] %vm515, %v481
        %517 = vst.msk [vmem:[%s268 + $0x8] sm:$0x1] %vm515, %v495
        %518 = vst.msk [vmem:[%s268 + $0x10] sm:$0x1] %vm515, %v503
        %519 = vst.msk [vmem:[%s268 + $0x18] sm:$0x1] %vm515, %v505
        %520 = vst.msk [vmem:[%s268 + $0x20] sm:$0x1] %vm515, %v488
        %521 = vst.msk [vmem:[%s268 + $0x28] sm:$0x1] %vm515, %v502
        %522 = vst.msk [vmem:[%s268 + $0x30] sm:$0x1] %vm515, %v504
        %523 = vst.msk [vmem:[%s268 + $0x38] sm:$0x1] %vm515, %v506
        %v524 = vld [vmem:[%s236 + $0x2] sm:$0x1]
        %v525 = vld [vmem:[%s236 + $0x12] sm:$0x1]
        %v526 = vld [vmem:[%s236 + $0x22] sm:$0x1]
        %v527 = vld [vmem:[%s236 + $0x32] sm:$0x1]
        %v532 = vrot.slane %v525, 7
        %v533 = vsel %vm292, %v532, %v524
        %v534 = vrot.slane %v526, 6
        %v535 = vsel %vm295, %v534, %v533
        %v536 = vrot.slane %v527, 5
        %v537 = vsel %vm298, %v536, %v535
        %v538 = vsel %vm304, %v537, 0
        %540 = vmatprep.subr.mxu0 0.0
        %541 = vmatpush1.msra.mxu0 %v538
        %542 = vmatprep.subr.mxu0 0.0
        %543 = vmatpush1.msra.mxu0 0.0
        %544 = vmatprep.subr.mxu0 0.0
        %545 = vmatpush1.msra.mxu0 0.0
        %546 = vmatprep.subr.mxu0 0.0
        %547 = vmatpush1.msra.mxu0 0.0
        %548 = vmatprep.subr.mxu0 0.0
        %549 = vmatpush1.msra.mxu0 0.0
        %550 = vmatprep.subr.mxu0 0.0
        %551 = vmatpush1.msra.mxu0 0.0
        %552 = vmatprep.subr.mxu0 0.0
        %553 = vmatpush1.msra.mxu0 0.0
        %554 = vmatprep.subr.mxu0 0.0
        %555 = vmatpush1.msra.mxu0 0.0
        %556 = vmatprep.subr.mxu0 0.0
        %557 = vmatpush1.msra.mxu0 0.0
        %558 = vmatprep.subr.mxu0 0.0
        %559 = vmatpush1.msra.mxu0 0.0
        %560 = vmatprep.subr.mxu0 0.0
        %561 = vmatpush1.msra.mxu0 0.0
        %562 = vmatprep.subr.mxu0 0.0
        %563 = vmatpush1.msra.mxu0 0.0
        %564 = vmatprep.subr.mxu0 0.0
        %565 = vmatpush1.msra.mxu0 0.0
        %566 = vmatprep.subr.mxu0 0.0
        %567 = vmatpush1.msra.mxu0 0.0
        %568 = vmatprep.subr.mxu0 0.0
        %569 = vmatpush1.msra.mxu0 0.0
        %570 = vmatprep.subr.mxu0 0.0
        %571 = vmatpush1.msra.mxu0 0.0
        %572 = vmatprep.subr.mxu0 0.0
        %573 = vmatpush1.msra.mxu0 0.0
        %574 = vmatprep.subr.mxu0 0.0
        %575 = vmatpush1.msra.mxu0 0.0
        %576 = vmatprep.subr.mxu0 0.0
        %577 = vmatpush1.msra.mxu0 0.0
        %578 = vmatprep.subr.mxu0 0.0
        %579 = vmatpush1.msra.mxu0 0.0
        %580 = vmatprep.subr.mxu0 0.0
        %581 = vmatpush1.msra.mxu0 0.0
        %582 = vmatprep.subr.mxu0 0.0
        %583 = vmatpush1.msra.mxu0 0.0
        %584 = vmatprep.subr.mxu0 0.0
        %585 = vmatpush1.msra.mxu0 0.0
        %586 = vmatprep.subr.mxu0 0.0
        %587 = vmatpush1.msra.mxu0 0.0
        %588 = vmatprep.subr.mxu0 0.0
        %589 = vmatpush1.msra.mxu0 0.0
        %590 = vmatprep.subr.mxu0 0.0
        %591 = vmatpush1.msra.mxu0 0.0
        %592 = vmatprep.subr.mxu0 0.0
        %593 = vmatpush1.msra.mxu0 0.0
        %594 = vmatprep.subr.mxu0 0.0
        %595 = vmatpush1.msra.mxu0 0.0
        %596 = vmatprep.subr.mxu0 0.0
        %597 = vmatpush1.msra.mxu0 0.0
        %598 = vmatprep.subr.mxu0 0.0
        %599 = vmatpush1.msra.mxu0 0.0
        %600 = vmatprep.subr.mxu0 0.0
        %601 = vmatpush1.msra.mxu0 0.0
        %602 = vmatprep.subr.mxu0 0.0
        %603 = vmatpush1.msra.mxu0 0.0
        %604 = vmatprep.mubr.f32.mxu0 0.0
        %605 = vmatmul.mubr.f32.gmra.mrb[0].mxu0 %v302
        %v606 = vpop.f32.mrb[0].mxu0
        %v607 = vadd.f32 0.0, %v606
        %v608 = vpop.f32.mrb[0].mxu0
        %609 = vdwg.mxu0
        %v611 = vsel %vm382, %v607, 0
        %613 = vmatprep.subr.mxu0 0.0
        %614 = vmatpush1.msra.mxu0 %v281
        %615 = vmatprep.subr.mxu0 0.0
        %616 = vmatpush1.msra.mxu0 %v282
        %617 = vmatprep.subr.mxu0 0.0
        %618 = vmatpush1.msra.mxu0 0.0
        %619 = vmatprep.subr.mxu0 0.0
        %620 = vmatpush1.msra.mxu0 0.0
        %621 = vmatprep.subr.mxu0 0.0
        %622 = vmatpush1.msra.mxu0 0.0
        %623 = vmatprep.subr.mxu0 0.0
        %624 = vmatpush1.msra.mxu0 0.0
        %625 = vmatprep.subr.mxu0 0.0
        %626 = vmatpush1.msra.mxu0 0.0
        %627 = vmatprep.subr.mxu0 0.0
        %628 = vmatpush1.msra.mxu0 0.0
        %629 = vmatprep.subr.mxu0 0.0
        %630 = vmatpush1.msra.mxu0 0.0
        %631 = vmatprep.subr.mxu0 0.0
        %632 = vmatpush1.msra.mxu0 0.0
        %633 = vmatprep.subr.mxu0 0.0
        %634 = vmatpush1.msra.mxu0 0.0
        %635 = vmatprep.subr.mxu0 0.0
        %636 = vmatpush1.msra.mxu0 0.0
        %637 = vmatprep.subr.mxu0 0.0
        %638 = vmatpush1.msra.mxu0 0.0
        %639 = vmatprep.subr.mxu0 0.0
        %640 = vmatpush1.msra.mxu0 0.0
        %641 = vmatprep.subr.mxu0 0.0
        %642 = vmatpush1.msra.mxu0 0.0
        %643 = vmatprep.subr.mxu0 0.0
        %644 = vmatpush1.msra.mxu0 0.0
        %645 = vmatprep.subr.mxu0 0.0
        %646 = vmatpush1.msra.mxu0 0.0
        %647 = vmatprep.subr.mxu0 0.0
        %648 = vmatpush1.msra.mxu0 0.0
        %649 = vmatprep.subr.mxu0 0.0
        %650 = vmatpush1.msra.mxu0 0.0
        %651 = vmatprep.subr.mxu0 0.0
        %652 = vmatpush1.msra.mxu0 0.0
        %653 = vmatprep.subr.mxu0 0.0
        %654 = vmatpush1.msra.mxu0 0.0
        %655 = vmatprep.subr.mxu0 0.0
        %656 = vmatpush1.msra.mxu0 0.0
        %657 = vmatprep.subr.mxu0 0.0
        %658 = vmatpush1.msra.mxu0 0.0
        %659 = vmatprep.subr.mxu0 0.0
        %660 = vmatpush1.msra.mxu0 0.0
        %661 = vmatprep.subr.mxu0 0.0
        %662 = vmatpush1.msra.mxu0 0.0
        %663 = vmatprep.subr.mxu0 0.0
        %664 = vmatpush1.msra.mxu0 0.0
        %665 = vmatprep.subr.mxu0 0.0
        %666 = vmatpush1.msra.mxu0 0.0
        %667 = vmatprep.subr.mxu0 0.0
        %668 = vmatpush1.msra.mxu0 0.0
        %669 = vmatprep.subr.mxu0 0.0
        %670 = vmatpush1.msra.mxu0 0.0
        %671 = vmatprep.subr.mxu0 0.0
        %672 = vmatpush1.msra.mxu0 0.0
        %673 = vmatprep.subr.mxu0 0.0
        %674 = vmatpush1.msra.mxu0 0.0
        %675 = vmatprep.subr.mxu0 0.0
        %676 = vmatpush1.msra.mxu0 0.0
        %677 = vmatprep.mubr.f32.mxu0 0.0
        %678 = vmatmul.mubr.f32.gmra.mrb[0].mxu0 %v611
        %v679 = vpop.f32.mrb[0].mxu0
        %v680 = vadd.f32 %v380, %v679
        %v681 = vpop.f32.mrb[0].mxu0
        %682 = vdwg.mxu0
        %v683 = vmax.f32 %v680, 0.0
        %v685 = vcombine.high %v683, %v683
        %v687 = vunpack.c.l.s4 1966171168
        %v688 = vunpack.c.0.s8 %v687
        %v689 = vlaneseq
        %v690 = vshrl.u32 %v689, 7
        %v691 = vsub.s32 %v688, %v690
        %v692 = vrot.slane %v683, %v691
        %v694 = vunpack.c.l.s4 1966171168
        %v695 = vunpack.c.0.s8 %v694
        %v696 = vlaneseq
        %v697 = vshrl.u32 %v696, 7
        %v698 = vsub.s32 %v695, %v697
        %v699 = vrot.slane %v685, %v698
        %v700 = vcombine.high %v692, %v692
        %v701 = vcombine.high %v699, %v699
        %v703 = vunpack.c.l.s4 1966171168
        %v704 = vunpack.c.0.s8 %v703
        %v705 = vlaneseq
        %v706 = vshrl.u32 %v705, 7
        %v707 = vsub.s32 %v704, %v706
        %v708 = vrot.slane %v692, %v707
        %v710 = vunpack.c.l.s4 1966171168
        %v711 = vunpack.c.0.s8 %v710
        %v712 = vlaneseq
        %v713 = vshrl.u32 %v712, 7
        %v714 = vsub.s32 %v711, %v713
        %v715 = vrot.slane %v699, %v714
        %v717 = vunpack.c.l.s4 1966171168
        %v718 = vunpack.c.0.s8 %v717
        %v719 = vlaneseq
        %v720 = vshrl.u32 %v719, 7
        %v721 = vsub.s32 %v718, %v720
        %v722 = vrot.slane %v700, %v721
        %v724 = vunpack.c.l.s4 1966171168
        %v725 = vunpack.c.0.s8 %v724
        %v726 = vlaneseq
        %v727 = vshrl.u32 %v726, 7
        %v728 = vsub.s32 %v725, %v727
        %v729 = vrot.slane %v701, %v728
        %v730 = vcombine.high %v708, %v708
        %v731 = vcombine.high %v715, %v715
        %v732 = vcombine.high %v722, %v722
        %v733 = vcombine.high %v729, %v729
        %742 = vst.msk [vmem:[%s268 + $0x1] sm:$0x1] %vm515, %v708
        %743 = vst.msk [vmem:[%s268 + $0x9] sm:$0x1] %vm515, %v722
        %744 = vst.msk [vmem:[%s268 + $0x11] sm:$0x1] %vm515, %v730
        %745 = vst.msk [vmem:[%s268 + $0x19] sm:$0x1] %vm515, %v732
        %746 = vst.msk [vmem:[%s268 + $0x21] sm:$0x1] %vm515, %v715
        %747 = vst.msk [vmem:[%s268 + $0x29] sm:$0x1] %vm515, %v729
        %748 = vst.msk [vmem:[%s268 + $0x31] sm:$0x1] %vm515, %v731
        %749 = vst.msk [vmem:[%s268 + $0x39] sm:$0x1] %vm515, %v733
        %v750 = vld [vmem:[%s236 + $0x4] sm:$0x1]
        %v751 = vld [vmem:[%s236 + $0x14] sm:$0x1]
        %v752 = vld [vmem:[%s236 + $0x24] sm:$0x1]
        %v753 = vld [vmem:[%s236 + $0x34] sm:$0x1]
        %v758 = vrot.slane %v751, 7
        %v759 = vsel %vm292, %v758, %v750
        %v760 = vrot.slane %v752, 6
        %v761 = vsel %vm295, %v760, %v759
        %v762 = vrot.slane %v753, 5
        %v763 = vsel %vm298, %v762, %v761
        %v764 = vsel %vm304, %v763, 0
        %766 = vmatprep.subr.mxu0 0.0
        %767 = vmatpush1.msra.mxu0 %v764
        %768 = vmatprep.subr.mxu0 0.0
        %769 = vmatpush1.msra.mxu0 0.0
        %770 = vmatprep.subr.mxu0 0.0
        %771 = vmatpush1.msra.mxu0 0.0
        %772 = vmatprep.subr.mxu0 0.0
        %773 = vmatpush1.msra.mxu0 0.0
        %774 = vmatprep.subr.mxu0 0.0
        %775 = vmatpush1.msra.mxu0 0.0
        %776 = vmatprep.subr.mxu0 0.0
        %777 = vmatpush1.msra.mxu0 0.0
        %778 = vmatprep.subr.mxu0 0.0
        %779 = vmatpush1.msra.mxu0 0.0
        %780 = vmatprep.subr.mxu0 0.0
        %781 = vmatpush1.msra.mxu0 0.0
        %782 = vmatprep.subr.mxu0 0.0
        %783 = vmatpush1.msra.mxu0 0.0
        %784 = vmatprep.subr.mxu0 0.0
        %785 = vmatpush1.msra.mxu0 0.0
        %786 = vmatprep.subr.mxu0 0.0
        %787 = vmatpush1.msra.mxu0 0.0
        %788 = vmatprep.subr.mxu0 0.0
        %789 = vmatpush1.msra.mxu0 0.0
        %790 = vmatprep.subr.mxu0 0.0
        %791 = vmatpush1.msra.mxu0 0.0
        %792 = vmatprep.subr.mxu0 0.0
        %793 = vmatpush1.msra.mxu0 0.0
        %794 = vmatprep.subr.mxu0 0.0
        %795 = vmatpush1.msra.mxu0 0.0
        %796 = vmatprep.subr.mxu0 0.0
        %797 = vmatpush1.msra.mxu0 0.0
        %798 = vmatprep.subr.mxu0 0.0
        %799 = vmatpush1.msra.mxu0 0.0
        %800 = vmatprep.subr.mxu0 0.0
        %801 = vmatpush1.msra.mxu0 0.0
        %802 = vmatprep.subr.mxu0 0.0
        %803 = vmatpush1.msra.mxu0 0.0
        %804 = vmatprep.subr.mxu0 0.0
        %805 = vmatpush1.msra.mxu0 0.0
        %806 = vmatprep.subr.mxu0 0.0
        %807 = vmatpush1.msra.mxu0 0.0
        %808 = vmatprep.subr.mxu0 0.0
        %809 = vmatpush1.msra.mxu0 0.0
        %810 = vmatprep.subr.mxu0 0.0
        %811 = vmatpush1.msra.mxu0 0.0
        %812 = vmatprep.subr.mxu0 0.0
        %813 = vmatpush1.msra.mxu0 0.0
        %814 = vmatprep.subr.mxu0 0.0
        %815 = vmatpush1.msra.mxu0 0.0
        %816 = vmatprep.subr.mxu0 0.0
        %817 = vmatpush1.msra.mxu0 0.0
        %818 = vmatprep.subr.mxu0 0.0
        %819 = vmatpush1.msra.mxu0 0.0
        %820 = vmatprep.subr.mxu0 0.0
        %821 = vmatpush1.msra.mxu0 0.0
        %822 = vmatprep.subr.mxu0 0.0
        %823 = vmatpush1.msra.mxu0 0.0
        %824 = vmatprep.subr.mxu0 0.0
        %825 = vmatpush1.msra.mxu0 0.0
        %826 = vmatprep.subr.mxu0 0.0
        %827 = vmatpush1.msra.mxu0 0.0
        %828 = vmatprep.subr.mxu0 0.0
        %829 = vmatpush1.msra.mxu0 0.0
        %830 = vmatprep.mubr.f32.mxu0 0.0
        %831 = vmatmul.mubr.f32.gmra.mrb[0].mxu0 %v302
        %v832 = vpop.f32.mrb[0].mxu0
        %v833 = vadd.f32 0.0, %v832
        %v834 = vpop.f32.mrb[0].mxu0
        %835 = vdwg.mxu0
        %v837 = vsel %vm382, %v833, 0
        %839 = vmatprep.subr.mxu0 0.0
        %840 = vmatpush1.msra.mxu0 %v281
        %841 = vmatprep.subr.mxu0 0.0
        %842 = vmatpush1.msra.mxu0 %v282
        %843 = vmatprep.subr.mxu0 0.0
        %844 = vmatpush1.msra.mxu0 0.0
        %845 = vmatprep.subr.mxu0 0.0
        %846 = vmatpush1.msra.mxu0 0.0
        %847 = vmatprep.subr.mxu0 0.0
        %848 = vmatpush1.msra.mxu0 0.0
        %849 = vmatprep.subr.mxu0 0.0
        %850 = vmatpush1.msra.mxu0 0.0
        %851 = vmatprep.subr.mxu0 0.0
        %852 = vmatpush1.msra.mxu0 0.0
        %853 = vmatprep.subr.mxu0 0.0
        %854 = vmatpush1.msra.mxu0 0.0
        %855 = vmatprep.subr.mxu0 0.0
        %856 = vmatpush1.msra.mxu0 0.0
        %857 = vmatprep.subr.mxu0 0.0
        %858 = vmatpush1.msra.mxu0 0.0
        %859 = vmatprep.subr.mxu0 0.0
        %860 = vmatpush1.msra.mxu0 0.0
        %861 = vmatprep.subr.mxu0 0.0
        %862 = vmatpush1.msra.mxu0 0.0
        %863 = vmatprep.subr.mxu0 0.0
        %864 = vmatpush1.msra.mxu0 0.0
        %865 = vmatprep.subr.mxu0 0.0
        %866 = vmatpush1.msra.mxu0 0.0
        %867 = vmatprep.subr.mxu0 0.0
        %868 = vmatpush1.msra.mxu0 0.0
        %869 = vmatprep.subr.mxu0 0.0
        %870 = vmatpush1.msra.mxu0 0.0
        %871 = vmatprep.subr.mxu0 0.0
        %872 = vmatpush1.msra.mxu0 0.0
        %873 = vmatprep.subr.mxu0 0.0
        %874 = vmatpush1.msra.mxu0 0.0
        %875 = vmatprep.subr.mxu0 0.0
        %876 = vmatpush1.msra.mxu0 0.0
        %877 = vmatprep.subr.mxu0 0.0
        %878 = vmatpush1.msra.mxu0 0.0
        %879 = vmatprep.subr.mxu0 0.0
        %880 = vmatpush1.msra.mxu0 0.0
        %881 = vmatprep.subr.mxu0 0.0
        %882 = vmatpush1.msra.mxu0 0.0
        %883 = vmatprep.subr.mxu0 0.0
        %884 = vmatpush1.msra.mxu0 0.0
        %885 = vmatprep.subr.mxu0 0.0
        %886 = vmatpush1.msra.mxu0 0.0
        %887 = vmatprep.subr.mxu0 0.0
        %888 = vmatpush1.msra.mxu0 0.0
        %889 = vmatprep.subr.mxu0 0.0
        %890 = vmatpush1.msra.mxu0 0.0
        %891 = vmatprep.subr.mxu0 0.0
        %892 = vmatpush1.msra.mxu0 0.0
        %893 = vmatprep.subr.mxu0 0.0
        %894 = vmatpush1.msra.mxu0 0.0
        %895 = vmatprep.subr.mxu0 0.0
        %896 = vmatpush1.msra.mxu0 0.0
        %897 = vmatprep.subr.mxu0 0.0
        %898 = vmatpush1.msra.mxu0 0.0
        %899 = vmatprep.subr.mxu0 0.0
        %900 = vmatpush1.msra.mxu0 0.0
        %901 = vmatprep.subr.mxu0 0.0
        %902 = vmatpush1.msra.mxu0 0.0
        %903 = vmatprep.mubr.f32.mxu0 0.0
        %904 = vmatmul.mubr.f32.gmra.mrb[0].mxu0 %v837
        %v905 = vpop.f32.mrb[0].mxu0
        %v906 = vadd.f32 %v380, %v905
        %v907 = vpop.f32.mrb[0].mxu0
        %908 = vdwg.mxu0
        %v909 = vmax.f32 %v906, 0.0
        %v911 = vcombine.high %v909, %v909
        %v913 = vunpack.c.l.s4 1966171168
        %v914 = vunpack.c.0.s8 %v913
        %v915 = vlaneseq
        %v916 = vshrl.u32 %v915, 7
        %v917 = vsub.s32 %v914, %v916
        %v918 = vrot.slane %v909, %v917
        %v920 = vunpack.c.l.s4 1966171168
        %v921 = vunpack.c.0.s8 %v920
        %v922 = vlaneseq
        %v923 = vshrl.u32 %v922, 7
        %v924 = vsub.s32 %v921, %v923
        %v925 = vrot.slane %v911, %v924
        %v926 = vcombine.high %v918, %v918
        %v927 = vcombine.high %v925, %v925
        %v929 = vunpack.c.l.s4 1966171168
        %v930 = vunpack.c.0.s8 %v929
        %v931 = vlaneseq
        %v932 = vshrl.u32 %v931, 7
        %v933 = vsub.s32 %v930, %v932
        %v934 = vrot.slane %v918, %v933
        %v936 = vunpack.c.l.s4 1966171168
        %v937 = vunpack.c.0.s8 %v936
        %v938 = vlaneseq
        %v939 = vshrl.u32 %v938, 7
        %v940 = vsub.s32 %v937, %v939
        %v941 = vrot.slane %v925, %v940
        %v943 = vunpack.c.l.s4 1966171168
        %v944 = vunpack.c.0.s8 %v943
        %v945 = vlaneseq
        %v946 = vshrl.u32 %v945, 7
        %v947 = vsub.s32 %v944, %v946
        %v948 = vrot.slane %v926, %v947
        %v950 = vunpack.c.l.s4 1966171168
        %v951 = vunpack.c.0.s8 %v950
        %v952 = vlaneseq
        %v953 = vshrl.u32 %v952, 7
        %v954 = vsub.s32 %v951, %v953
        %v955 = vrot.slane %v927, %v954
        %v956 = vcombine.high %v934, %v934
        %v957 = vcombine.high %v941, %v941
        %v958 = vcombine.high %v948, %v948
        %v959 = vcombine.high %v955, %v955
        %968 = vst.msk [vmem:[%s268 + $0x2] sm:$0x1] %vm515, %v934
        %969 = vst.msk [vmem:[%s268 + $0xa] sm:$0x1] %vm515, %v948
        %970 = vst.msk [vmem:[%s268 + $0x12] sm:$0x1] %vm515, %v956
        %971 = vst.msk [vmem:[%s268 + $0x1a] sm:$0x1] %vm515, %v958
        %972 = vst.msk [vmem:[%s268 + $0x22] sm:$0x1] %vm515, %v941
        %973 = vst.msk [vmem:[%s268 + $0x2a] sm:$0x1] %vm515, %v955
        %974 = vst.msk [vmem:[%s268 + $0x32] sm:$0x1] %vm515, %v957
        %975 = vst.msk [vmem:[%s268 + $0x3a] sm:$0x1] %vm515, %v959
        %v976 = vld [vmem:[%s236 + $0x6] sm:$0x1]
        %v977 = vld [vmem:[%s236 + $0x16] sm:$0x1]
        %v978 = vld [vmem:[%s236 + $0x26] sm:$0x1]
        %v979 = vld [vmem:[%s236 + $0x36] sm:$0x1]
        %v984 = vrot.slane %v977, 7
        %v985 = vsel %vm292, %v984, %v976
        %v986 = vrot.slane %v978, 6
        %v987 = vsel %vm295, %v986, %v985
        %v988 = vrot.slane %v979, 5
        %v989 = vsel %vm298, %v988, %v987
        %v990 = vsel %vm304, %v989, 0
        %992 = vmatprep.subr.mxu0 0.0
        %993 = vmatpush1.msra.mxu0 %v990
        %994 = vmatprep.subr.mxu0 0.0
        %995 = vmatpush1.msra.mxu0 0.0
        %996 = vmatprep.subr.mxu0 0.0
        %997 = vmatpush1.msra.mxu0 0.0
        %998 = vmatprep.subr.mxu0 0.0
        %999 = vmatpush1.msra.mxu0 0.0
        %1000 = vmatprep.subr.mxu0 0.0
        %1001 = vmatpush1.msra.mxu0 0.0
        %1002 = vmatprep.subr.mxu0 0.0
        %1003 = vmatpush1.msra.mxu0 0.0
        %1004 = vmatprep.subr.mxu0 0.0
        %1005 = vmatpush1.msra.mxu0 0.0
        %1006 = vmatprep.subr.mxu0 0.0
        %1007 = vmatpush1.msra.mxu0 0.0
        %1008 = vmatprep.subr.mxu0 0.0
        %1009 = vmatpush1.msra.mxu0 0.0
        %1010 = vmatprep.subr.mxu0 0.0
        %1011 = vmatpush1.msra.mxu0 0.0
        %1012 = vmatprep.subr.mxu0 0.0
        %1013 = vmatpush1.msra.mxu0 0.0
        %1014 = vmatprep.subr.mxu0 0.0
        %1015 = vmatpush1.msra.mxu0 0.0
        %1016 = vmatprep.subr.mxu0 0.0
        %1017 = vmatpush1.msra.mxu0 0.0
        %1018 = vmatprep.subr.mxu0 0.0
        %1019 = vmatpush1.msra.mxu0 0.0
        %1020 = vmatprep.subr.mxu0 0.0
        %1021 = vmatpush1.msra.mxu0 0.0
        %1022 = vmatprep.subr.mxu0 0.0
        %1023 = vmatpush1.msra.mxu0 0.0
        %1024 = vmatprep.subr.mxu0 0.0
        %1025 = vmatpush1.msra.mxu0 0.0
        %1026 = vmatprep.subr.mxu0 0.0
        %1027 = vmatpush1.msra.mxu0 0.0
        %1028 = vmatprep.subr.mxu0 0.0
        %1029 = vmatpush1.msra.mxu0 0.0
        %1030 = vmatprep.subr.mxu0 0.0
        %1031 = vmatpush1.msra.mxu0 0.0
        %1032 = vmatprep.subr.mxu0 0.0
        %1033 = vmatpush1.msra.mxu0 0.0
        %1034 = vmatprep.subr.mxu0 0.0
        %1035 = vmatpush1.msra.mxu0 0.0
        %1036 = vmatprep.subr.mxu0 0.0
        %1037 = vmatpush1.msra.mxu0 0.0
        %1038 = vmatprep.subr.mxu0 0.0
        %1039 = vmatpush1.msra.mxu0 0.0
        %1040 = vmatprep.subr.mxu0 0.0
        %1041 = vmatpush1.msra.mxu0 0.0
        %1042 = vmatprep.subr.mxu0 0.0
        %1043 = vmatpush1.msra.mxu0 0.0
        %1044 = vmatprep.subr.mxu0 0.0
        %1045 = vmatpush1.msra.mxu0 0.0
        %1046 = vmatprep.subr.mxu0 0.0
        %1047 = vmatpush1.msra.mxu0 0.0
        %1048 = vmatprep.subr.mxu0 0.0
        %1049 = vmatpush1.msra.mxu0 0.0
        %1050 = vmatprep.subr.mxu0 0.0
        %1051 = vmatpush1.msra.mxu0 0.0
        %1052 = vmatprep.subr.mxu0 0.0
        %1053 = vmatpush1.msra.mxu0 0.0
        %1054 = vmatprep.subr.mxu0 0.0
        %1055 = vmatpush1.msra.mxu0 0.0
        %1056 = vmatprep.mubr.f32.mxu0 0.0
        %1057 = vmatmul.mubr.f32.gmra.mrb[0].mxu0 %v302
        %v1058 = vpop.f32.mrb[0].mxu0
        %v1059 = vadd.f32 0.0, %v1058
        %v1060 = vpop.f32.mrb[0].mxu0
        %1061 = vdwg.mxu0
        %v1063 = vsel %vm382, %v1059, 0
        %1065 = vmatprep.subr.mxu0 0.0
        %1066 = vmatpush1.msra.mxu0 %v281
        %1067 = vmatprep.subr.mxu0 0.0
        %1068 = vmatpush1.msra.mxu0 %v282
        %1069 = vmatprep.subr.mxu0 0.0
        %1070 = vmatpush1.msra.mxu0 0.0
        %1071 = vmatprep.subr.mxu0 0.0
        %1072 = vmatpush1.msra.mxu0 0.0
        %1073 = vmatprep.subr.mxu0 0.0
        %1074 = vmatpush1.msra.mxu0 0.0
        %1075 = vmatprep.subr.mxu0 0.0
        %1076 = vmatpush1.msra.mxu0 0.0
        %1077 = vmatprep.subr.mxu0 0.0
        %1078 = vmatpush1.msra.mxu0 0.0
        %1079 = vmatprep.subr.mxu0 0.0
        %1080 = vmatpush1.msra.mxu0 0.0
        %1081 = vmatprep.subr.mxu0 0.0
        %1082 = vmatpush1.msra.mxu0 0.0
        %1083 = vmatprep.subr.mxu0 0.0
        %1084 = vmatpush1.msra.mxu0 0.0
        %1085 = vmatprep.subr.mxu0 0.0
        %1086 = vmatpush1.msra.mxu0 0.0
        %1087 = vmatprep.subr.mxu0 0.0
        %1088 = vmatpush1.msra.mxu0 0.0
        %1089 = vmatprep.subr.mxu0 0.0
        %1090 = vmatpush1.msra.mxu0 0.0
        %1091 = vmatprep.subr.mxu0 0.0
        %1092 = vmatpush1.msra.mxu0 0.0
        %1093 = vmatprep.subr.mxu0 0.0
        %1094 = vmatpush1.msra.mxu0 0.0
        %1095 = vmatprep.subr.mxu0 0.0
        %1096 = vmatpush1.msra.mxu0 0.0
        %1097 = vmatprep.subr.mxu0 0.0
        %1098 = vmatpush1.msra.mxu0 0.0
        %1099 = vmatprep.subr.mxu0 0.0
        %1100 = vmatpush1.msra.mxu0 0.0
        %1101 = vmatprep.subr.mxu0 0.0
        %1102 = vmatpush1.msra.mxu0 0.0
        %1103 = vmatprep.subr.mxu0 0.0
        %1104 = vmatpush1.msra.mxu0 0.0
        %1105 = vmatprep.subr.mxu0 0.0
        %1106 = vmatpush1.msra.mxu0 0.0
        %1107 = vmatprep.subr.mxu0 0.0
        %1108 = vmatpush1.msra.mxu0 0.0
        %1109 = vmatprep.subr.mxu0 0.0
        %1110 = vmatpush1.msra.mxu0 0.0
        %1111 = vmatprep.subr.mxu0 0.0
        %1112 = vmatpush1.msra.mxu0 0.0
        %1113 = vmatprep.subr.mxu0 0.0
        %1114 = vmatpush1.msra.mxu0 0.0
        %1115 = vmatprep.subr.mxu0 0.0
        %1116 = vmatpush1.msra.mxu0 0.0
        %1117 = vmatprep.subr.mxu0 0.0
        %1118 = vmatpush1.msra.mxu0 0.0
        %1119 = vmatprep.subr.mxu0 0.0
        %1120 = vmatpush1.msra.mxu0 0.0
        %1121 = vmatprep.subr.mxu0 0.0
        %1122 = vmatpush1.msra.mxu0 0.0
        %1123 = vmatprep.subr.mxu0 0.0
        %1124 = vmatpush1.msra.mxu0 0.0
        %1125 = vmatprep.subr.mxu0 0.0
        %1126 = vmatpush1.msra.mxu0 0.0
        %1127 = vmatprep.subr.mxu0 0.0
        %1128 = vmatpush1.msra.mxu0 0.0
        %1129 = vmatprep.mubr.f32.mxu0 0.0
        %1130 = vmatmul.mubr.f32.gmra.mrb[0].mxu0 %v1063
        %v1131 = vpop.f32.mrb[0].mxu0
        %v1132 = vadd.f32 %v380, %v1131
        %v1133 = vpop.f32.mrb[0].mxu0
        %1134 = vdwg.mxu0
        %v1135 = vmax.f32 %v1132, 0.0
        %v1137 = vcombine.high %v1135, %v1135
        %v1139 = vunpack.c.l.s4 1966171168
        %v1140 = vunpack.c.0.s8 %v1139
        %v1141 = vlaneseq
        %v1142 = vshrl.u32 %v1141, 7
        %v1143 = vsub.s32 %v1140, %v1142
        %v1144 = vrot.slane %v1135, %v1143
        %v1146 = vunpack.c.l.s4 1966171168
        %v1147 = vunpack.c.0.s8 %v1146
        %v1148 = vlaneseq
        %v1149 = vshrl.u32 %v1148, 7
        %v1150 = vsub.s32 %v1147, %v1149
        %v1151 = vrot.slane %v1137, %v1150
        %v1152 = vcombine.high %v1144, %v1144
        %v1153 = vcombine.high %v1151, %v1151
        %v1155 = vunpack.c.l.s4 1966171168
        %v1156 = vunpack.c.0.s8 %v1155
        %v1157 = vlaneseq
        %v1158 = vshrl.u32 %v1157, 7
        %v1159 = vsub.s32 %v1156, %v1158
        %v1160 = vrot.slane %v1144, %v1159
        %v1162 = vunpack.c.l.s4 1966171168
        %v1163 = vunpack.c.0.s8 %v1162
        %v1164 = vlaneseq
        %v1165 = vshrl.u32 %v1164, 7
        %v1166 = vsub.s32 %v1163, %v1165
        %v1167 = vrot.slane %v1151, %v1166
        %v1169 = vunpack.c.l.s4 1966171168
        %v1170 = vunpack.c.0.s8 %v1169
        %v1171 = vlaneseq
        %v1172 = vshrl.u32 %v1171, 7
        %v1173 = vsub.s32 %v1170, %v1172
        %v1174 = vrot.slane %v1152, %v1173
        %v1176 = vunpack.c.l.s4 1966171168
        %v1177 = vunpack.c.0.s8 %v1176
        %v1178 = vlaneseq
        %v1179 = vshrl.u32 %v1178, 7
        %v1180 = vsub.s32 %v1177, %v1179
        %v1181 = vrot.slane %v1153, %v1180
        %v1182 = vcombine.high %v1160, %v1160
        %v1183 = vcombine.high %v1167, %v1167
        %v1184 = vcombine.high %v1174, %v1174
        %v1185 = vcombine.high %v1181, %v1181
        %1194 = vst.msk [vmem:[%s268 + $0x3] sm:$0x1] %vm515, %v1160
        %1195 = vst.msk [vmem:[%s268 + $0xb] sm:$0x1] %vm515, %v1174
        %1196 = vst.msk [vmem:[%s268 + $0x13] sm:$0x1] %vm515, %v1182
        %1197 = vst.msk [vmem:[%s268 + $0x1b] sm:$0x1] %vm515, %v1184
        %1198 = vst.msk [vmem:[%s268 + $0x23] sm:$0x1] %vm515, %v1167
        %1199 = vst.msk [vmem:[%s268 + $0x2b] sm:$0x1] %vm515, %v1181
        %1200 = vst.msk [vmem:[%s268 + $0x33] sm:$0x1] %vm515, %v1183
        %1201 = vst.msk [vmem:[%s268 + $0x3b] sm:$0x1] %vm515, %v1185
        %v1202 = vld [vmem:[%s236 + $0x8] sm:$0x1]
        %v1203 = vld [vmem:[%s236 + $0x18] sm:$0x1]
        %v1204 = vld [vmem:[%s236 + $0x28] sm:$0x1]
        %v1205 = vld [vmem:[%s236 + $0x38] sm:$0x1]
        %v1210 = vrot.slane %v1203, 7
        %v1211 = vsel %vm292, %v1210, %v1202
        %v1212 = vrot.slane %v1204, 6
        %v1213 = vsel %vm295, %v1212, %v1211
        %v1214 = vrot.slane %v1205, 5
        %v1215 = vsel %vm298, %v1214, %v1213
        %v1216 = vsel %vm304, %v1215, 0
        %1218 = vmatprep.subr.mxu0 0.0
        %1219 = vmatpush1.msra.mxu0 %v1216
        %1220 = vmatprep.subr.mxu0 0.0
        %1221 = vmatpush1.msra.mxu0 0.0
        %1222 = vmatprep.subr.mxu0 0.0
        %1223 = vmatpush1.msra.mxu0 0.0
        %1224 = vmatprep.subr.mxu0 0.0
        %1225 = vmatpush1.msra.mxu0 0.0
        %1226 = vmatprep.subr.mxu0 0.0
        %1227 = vmatpush1.msra.mxu0 0.0
        %1228 = vmatprep.subr.mxu0 0.0
        %1229 = vmatpush1.msra.mxu0 0.0
        %1230 = vmatprep.subr.mxu0 0.0
        %1231 = vmatpush1.msra.mxu0 0.0
        %1232 = vmatprep.subr.mxu0 0.0
        %1233 = vmatpush1.msra.mxu0 0.0
        %1234 = vmatprep.subr.mxu0 0.0
        %1235 = vmatpush1.msra.mxu0 0.0
        %1236 = vmatprep.subr.mxu0 0.0
        %1237 = vmatpush1.msra.mxu0 0.0
        %1238 = vmatprep.subr.mxu0 0.0
        %1239 = vmatpush1.msra.mxu0 0.0
        %1240 = vmatprep.subr.mxu0 0.0
        %1241 = vmatpush1.msra.mxu0 0.0
        %1242 = vmatprep.subr.mxu0 0.0
        %1243 = vmatpush1.msra.mxu0 0.0
        %1244 = vmatprep.subr.mxu0 0.0
        %1245 = vmatpush1.msra.mxu0 0.0
        %1246 = vmatprep.subr.mxu0 0.0
        %1247 = vmatpush1.msra.mxu0 0.0
        %1248 = vmatprep.subr.mxu0 0.0
        %1249 = vmatpush1.msra.mxu0 0.0
        %1250 = vmatprep.subr.mxu0 0.0
        %1251 = vmatpush1.msra.mxu0 0.0
        %1252 = vmatprep.subr.mxu0 0.0
        %1253 = vmatpush1.msra.mxu0 0.0
        %1254 = vmatprep.subr.mxu0 0.0
        %1255 = vmatpush1.msra.mxu0 0.0
        %1256 = vmatprep.subr.mxu0 0.0
        %1257 = vmatpush1.msra.mxu0 0.0
        %1258 = vmatprep.subr.mxu0 0.0
        %1259 = vmatpush1.msra.mxu0 0.0
        %1260 = vmatprep.subr.mxu0 0.0
        %1261 = vmatpush1.msra.mxu0 0.0
        %1262 = vmatprep.subr.mxu0 0.0
        %1263 = vmatpush1.msra.mxu0 0.0
        %1264 = vmatprep.subr.mxu0 0.0
        %1265 = vmatpush1.msra.mxu0 0.0
        %1266 = vmatprep.subr.mxu0 0.0
        %1267 = vmatpush1.msra.mxu0 0.0
        %1268 = vmatprep.subr.mxu0 0.0
        %1269 = vmatpush1.msra.mxu0 0.0
        %1270 = vmatprep.subr.mxu0 0.0
        %1271 = vmatpush1.msra.mxu0 0.0
        %1272 = vmatprep.subr.mxu0 0.0
        %1273 = vmatpush1.msra.mxu0 0.0
        %1274 = vmatprep.subr.mxu0 0.0
        %1275 = vmatpush1.msra.mxu0 0.0
        %1276 = vmatprep.subr.mxu0 0.0
        %1277 = vmatpush1.msra.mxu0 0.0
        %1278 = vmatprep.subr.mxu0 0.0
        %1279 = vmatpush1.msra.mxu0 0.0
        %1280 = vmatprep.subr.mxu0 0.0
        %1281 = vmatpush1.msra.mxu0 0.0
        %1282 = vmatprep.mubr.f32.mxu0 0.0
        %1283 = vmatmul.mubr.f32.gmra.mrb[0].mxu0 %v302
        %v1284 = vpop.f32.mrb[0].mxu0
        %v1285 = vadd.f32 0.0, %v1284
        %v1286 = vpop.f32.mrb[0].mxu0
        %1287 = vdwg.mxu0
        %v1289 = vsel %vm382, %v1285, 0
        %1291 = vmatprep.subr.mxu0 0.0
        %1292 = vmatpush1.msra.mxu0 %v281
        %1293 = vmatprep.subr.mxu0 0.0
        %1294 = vmatpush1.msra.mxu0 %v282
        %1295 = vmatprep.subr.mxu0 0.0
        %1296 = vmatpush1.msra.mxu0 0.0
        %1297 = vmatprep.subr.mxu0 0.0
        %1298 = vmatpush1.msra.mxu0 0.0
        %1299 = vmatprep.subr.mxu0 0.0
        %1300 = vmatpush1.msra.mxu0 0.0
        %1301 = vmatprep.subr.mxu0 0.0
        %1302 = vmatpush1.msra.mxu0 0.0
        %1303 = vmatprep.subr.mxu0 0.0
        %1304 = vmatpush1.msra.mxu0 0.0
        %1305 = vmatprep.subr.mxu0 0.0
        %1306 = vmatpush1.msra.mxu0 0.0
        %1307 = vmatprep.subr.mxu0 0.0
        %1308 = vmatpush1.msra.mxu0 0.0
        %1309 = vmatprep.subr.mxu0 0.0
        %1310 = vmatpush1.msra.mxu0 0.0
        %1311 = vmatprep.subr.mxu0 0.0
        %1312 = vmatpush1.msra.mxu0 0.0
        %1313 = vmatprep.subr.mxu0 0.0
        %1314 = vmatpush1.msra.mxu0 0.0
        %1315 = vmatprep.subr.mxu0 0.0
        %1316 = vmatpush1.msra.mxu0 0.0
        %1317 = vmatprep.subr.mxu0 0.0
        %1318 = vmatpush1.msra.mxu0 0.0
        %1319 = vmatprep.subr.mxu0 0.0
        %1320 = vmatpush1.msra.mxu0 0.0
        %1321 = vmatprep.subr.mxu0 0.0
        %1322 = vmatpush1.msra.mxu0 0.0
        %1323 = vmatprep.subr.mxu0 0.0
        %1324 = vmatpush1.msra.mxu0 0.0
        %1325 = vmatprep.subr.mxu0 0.0
        %1326 = vmatpush1.msra.mxu0 0.0
        %1327 = vmatprep.subr.mxu0 0.0
        %1328 = vmatpush1.msra.mxu0 0.0
        %1329 = vmatprep.subr.mxu0 0.0
        %1330 = vmatpush1.msra.mxu0 0.0
        %1331 = vmatprep.subr.mxu0 0.0
        %1332 = vmatpush1.msra.mxu0 0.0
        %1333 = vmatprep.subr.mxu0 0.0
        %1334 = vmatpush1.msra.mxu0 0.0
        %1335 = vmatprep.subr.mxu0 0.0
        %1336 = vmatpush1.msra.mxu0 0.0
        %1337 = vmatprep.subr.mxu0 0.0
        %1338 = vmatpush1.msra.mxu0 0.0
        %1339 = vmatprep.subr.mxu0 0.0
        %1340 = vmatpush1.msra.mxu0 0.0
        %1341 = vmatprep.subr.mxu0 0.0
        %1342 = vmatpush1.msra.mxu0 0.0
        %1343 = vmatprep.subr.mxu0 0.0
        %1344 = vmatpush1.msra.mxu0 0.0
        %1345 = vmatprep.subr.mxu0 0.0
        %1346 = vmatpush1.msra.mxu0 0.0
        %1347 = vmatprep.subr.mxu0 0.0
        %1348 = vmatpush1.msra.mxu0 0.0
        %1349 = vmatprep.subr.mxu0 0.0
        %1350 = vmatpush1.msra.mxu0 0.0
        %1351 = vmatprep.subr.mxu0 0.0
        %1352 = vmatpush1.msra.mxu0 0.0
        %1353 = vmatprep.subr.mxu0 0.0
        %1354 = vmatpush1.msra.mxu0 0.0
        %1355 = vmatprep.mubr.f32.mxu0 0.0
        %1356 = vmatmul.mubr.f32.gmra.mrb[0].mxu0 %v1289
        %v1357 = vpop.f32.mrb[0].mxu0
        %v1358 = vadd.f32 %v380, %v1357
        %v1359 = vpop.f32.mrb[0].mxu0
        %1360 = vdwg.mxu0
        %v1361 = vmax.f32 %v1358, 0.0
        %v1363 = vcombine.high %v1361, %v1361
        %v1365 = vunpack.c.l.s4 1966171168
        %v1366 = vunpack.c.0.s8 %v1365
        %v1367 = vlaneseq
        %v1368 = vshrl.u32 %v1367, 7
        %v1369 = vsub.s32 %v1366, %v1368
        %v1370 = vrot.slane %v1361, %v1369
        %v1372 = vunpack.c.l.s4 1966171168
        %v1373 = vunpack.c.0.s8 %v1372
        %v1374 = vlaneseq
        %v1375 = vshrl.u32 %v1374, 7
        %v1376 = vsub.s32 %v1373, %v1375
        %v1377 = vrot.slane %v1363, %v1376
        %v1378 = vcombine.high %v1370, %v1370
        %v1379 = vcombine.high %v1377, %v1377
        %v1381 = vunpack.c.l.s4 1966171168
        %v1382 = vunpack.c.0.s8 %v1381
        %v1383 = vlaneseq
        %v1384 = vshrl.u32 %v1383, 7
        %v1385 = vsub.s32 %v1382, %v1384
        %v1386 = vrot.slane %v1370, %v1385
        %v1388 = vunpack.c.l.s4 1966171168
        %v1389 = vunpack.c.0.s8 %v1388
        %v1390 = vlaneseq
        %v1391 = vshrl.u32 %v1390, 7
        %v1392 = vsub.s32 %v1389, %v1391
        %v1393 = vrot.slane %v1377, %v1392
        %v1395 = vunpack.c.l.s4 1966171168
        %v1396 = vunpack.c.0.s8 %v1395
        %v1397 = vlaneseq
        %v1398 = vshrl.u32 %v1397, 7
        %v1399 = vsub.s32 %v1396, %v1398
        %v1400 = vrot.slane %v1378, %v1399
        %v1402 = vunpack.c.l.s4 1966171168
        %v1403 = vunpack.c.0.s8 %v1402
        %v1404 = vlaneseq
        %v1405 = vshrl.u32 %v1404, 7
        %v1406 = vsub.s32 %v1403, %v1405
        %v1407 = vrot.slane %v1379, %v1406
        %v1408 = vcombine.high %v1386, %v1386
        %v1409 = vcombine.high %v1393, %v1393
        %v1410 = vcombine.high %v1400, %v1400
        %v1411 = vcombine.high %v1407, %v1407
        %1420 = vst.msk [vmem:[%s268 + $0x4] sm:$0x1] %vm515, %v1386
        %1421 = vst.msk [vmem:[%s268 + $0xc] sm:$0x1] %vm515, %v1400
        %1422 = vst.msk [vmem:[%s268 + $0x14] sm:$0x1] %vm515, %v1408
        %1423 = vst.msk [vmem:[%s268 + $0x1c] sm:$0x1] %vm515, %v1410
        %1424 = vst.msk [vmem:[%s268 + $0x24] sm:$0x1] %vm515, %v1393
        %1425 = vst.msk [vmem:[%s268 + $0x2c] sm:$0x1] %vm515, %v1407
        %1426 = vst.msk [vmem:[%s268 + $0x34] sm:$0x1] %vm515, %v1409
        %1427 = vst.msk [vmem:[%s268 + $0x3c] sm:$0x1] %vm515, %v1411
        %v1428 = vld [vmem:[%s236 + $0xa] sm:$0x1]
        %v1429 = vld [vmem:[%s236 + $0x1a] sm:$0x1]
        %v1430 = vld [vmem:[%s236 + $0x2a] sm:$0x1]
        %v1431 = vld [vmem:[%s236 + $0x3a] sm:$0x1]
        %v1436 = vrot.slane %v1429, 7
        %v1437 = vsel %vm292, %v1436, %v1428
        %v1438 = vrot.slane %v1430, 6
        %v1439 = vsel %vm295, %v1438, %v1437
        %v1440 = vrot.slane %v1431, 5
        %v1441 = vsel %vm298, %v1440, %v1439
        %v1442 = vsel %vm304, %v1441, 0
        %1444 = vmatprep.subr.mxu0 0.0
        %1445 = vmatpush1.msra.mxu0 %v1442
        %1446 = vmatprep.subr.mxu0 0.0
        %1447 = vmatpush1.msra.mxu0 0.0
        %1448 = vmatprep.subr.mxu0 0.0
        %1449 = vmatpush1.msra.mxu0 0.0
        %1450 = vmatprep.subr.mxu0 0.0
        %1451 = vmatpush1.msra.mxu0 0.0
        %1452 = vmatprep.subr.mxu0 0.0
        %1453 = vmatpush1.msra.mxu0 0.0
        %1454 = vmatprep.subr.mxu0 0.0
        %1455 = vmatpush1.msra.mxu0 0.0
        %1456 = vmatprep.subr.mxu0 0.0
        %1457 = vmatpush1.msra.mxu0 0.0
        %1458 = vmatprep.subr.mxu0 0.0
        %1459 = vmatpush1.msra.mxu0 0.0
        %1460 = vmatprep.subr.mxu0 0.0
        %1461 = vmatpush1.msra.mxu0 0.0
        %1462 = vmatprep.subr.mxu0 0.0
        %1463 = vmatpush1.msra.mxu0 0.0
        %1464 = vmatprep.subr.mxu0 0.0
        %1465 = vmatpush1.msra.mxu0 0.0
        %1466 = vmatprep.subr.mxu0 0.0
        %1467 = vmatpush1.msra.mxu0 0.0
        %1468 = vmatprep.subr.mxu0 0.0
        %1469 = vmatpush1.msra.mxu0 0.0
        %1470 = vmatprep.subr.mxu0 0.0
        %1471 = vmatpush1.msra.mxu0 0.0
        %1472 = vmatprep.subr.mxu0 0.0
        %1473 = vmatpush1.msra.mxu0 0.0
        %1474 = vmatprep.subr.mxu0 0.0
        %1475 = vmatpush1.msra.mxu0 0.0
        %1476 = vmatprep.subr.mxu0 0.0
        %1477 = vmatpush1.msra.mxu0 0.0
        %1478 = vmatprep.subr.mxu0 0.0
        %1479 = vmatpush1.msra.mxu0 0.0
        %1480 = vmatprep.subr.mxu0 0.0
        %1481 = vmatpush1.msra.mxu0 0.0
        %1482 = vmatprep.subr.mxu0 0.0
        %1483 = vmatpush1.msra.mxu0 0.0
        %1484 = vmatprep.subr.mxu0 0.0
        %1485 = vmatpush1.msra.mxu0 0.0
        %1486 = vmatprep.subr.mxu0 0.0
        %1487 = vmatpush1.msra.mxu0 0.0
        %1488 = vmatprep.subr.mxu0 0.0
        %1489 = vmatpush1.msra.mxu0 0.0
        %1490 = vmatprep.subr.mxu0 0.0
        %1491 = vmatpush1.msra.mxu0 0.0
        %1492 = vmatprep.subr.mxu0 0.0
        %1493 = vmatpush1.msra.mxu0 0.0
        %1494 = vmatprep.subr.mxu0 0.0
        %1495 = vmatpush1.msra.mxu0 0.0
        %1496 = vmatprep.subr.mxu0 0.0
        %1497 = vmatpush1.msra.mxu0 0.0
        %1498 = vmatprep.subr.mxu0 0.0
        %1499 = vmatpush1.msra.mxu0 0.0
        %1500 = vmatprep.subr.mxu0 0.0
        %1501 = vmatpush1.msra.mxu0 0.0
        %1502 = vmatprep.subr.mxu0 0.0
        %1503 = vmatpush1.msra.mxu0 0.0
        %1504 = vmatprep.subr.mxu0 0.0
        %1505 = vmatpush1.msra.mxu0 0.0
        %1506 = vmatprep.subr.mxu0 0.0
        %1507 = vmatpush1.msra.mxu0 0.0
        %1508 = vmatprep.mubr.f32.mxu0 0.0
        %1509 = vmatmul.mubr.f32.gmra.mrb[0].mxu0 %v302
        %v1510 = vpop.f32.mrb[0].mxu0
        %v1511 = vadd.f32 0.0, %v1510
        %v1512 = vpop.f32.mrb[0].mxu0
        %1513 = vdwg.mxu0
        %v1515 = vsel %vm382, %v1511, 0
        %1517 = vmatprep.subr.mxu0 0.0
        %1518 = vmatpush1.msra.mxu0 %v281
        %1519 = vmatprep.subr.mxu0 0.0
        %1520 = vmatpush1.msra.mxu0 %v282
        %1521 = vmatprep.subr.mxu0 0.0
        %1522 = vmatpush1.msra.mxu0 0.0
        %1523 = vmatprep.subr.mxu0 0.0
        %1524 = vmatpush1.msra.mxu0 0.0
        %1525 = vmatprep.subr.mxu0 0.0
        %1526 = vmatpush1.msra.mxu0 0.0
        %1527 = vmatprep.subr.mxu0 0.0
        %1528 = vmatpush1.msra.mxu0 0.0
        %1529 = vmatprep.subr.mxu0 0.0
        %1530 = vmatpush1.msra.mxu0 0.0
        %1531 = vmatprep.subr.mxu0 0.0
        %1532 = vmatpush1.msra.mxu0 0.0
        %1533 = vmatprep.subr.mxu0 0.0
        %1534 = vmatpush1.msra.mxu0 0.0
        %1535 = vmatprep.subr.mxu0 0.0
        %1536 = vmatpush1.msra.mxu0 0.0
        %1537 = vmatprep.subr.mxu0 0.0
        %1538 = vmatpush1.msra.mxu0 0.0
        %1539 = vmatprep.subr.mxu0 0.0
        %1540 = vmatpush1.msra.mxu0 0.0
        %1541 = vmatprep.subr.mxu0 0.0
        %1542 = vmatpush1.msra.mxu0 0.0
        %1543 = vmatprep.subr.mxu0 0.0
        %1544 = vmatpush1.msra.mxu0 0.0
        %1545 = vmatprep.subr.mxu0 0.0
        %1546 = vmatpush1.msra.mxu0 0.0
        %1547 = vmatprep.subr.mxu0 0.0
        %1548 = vmatpush1.msra.mxu0 0.0
        %1549 = vmatprep.subr.mxu0 0.0
        %1550 = vmatpush1.msra.mxu0 0.0
        %1551 = vmatprep.subr.mxu0 0.0
        %1552 = vmatpush1.msra.mxu0 0.0
        %1553 = vmatprep.subr.mxu0 0.0
        %1554 = vmatpush1.msra.mxu0 0.0
        %1555 = vmatprep.subr.mxu0 0.0
        %1556 = vmatpush1.msra.mxu0 0.0
        %1557 = vmatprep.subr.mxu0 0.0
        %1558 = vmatpush1.msra.mxu0 0.0
        %1559 = vmatprep.subr.mxu0 0.0
        %1560 = vmatpush1.msra.mxu0 0.0
        %1561 = vmatprep.subr.mxu0 0.0
        %1562 = vmatpush1.msra.mxu0 0.0
        %1563 = vmatprep.subr.mxu0 0.0
        %1564 = vmatpush1.msra.mxu0 0.0
        %1565 = vmatprep.subr.mxu0 0.0
        %1566 = vmatpush1.msra.mxu0 0.0
        %1567 = vmatprep.subr.mxu0 0.0
        %1568 = vmatpush1.msra.mxu0 0.0
        %1569 = vmatprep.subr.mxu0 0.0
        %1570 = vmatpush1.msra.mxu0 0.0
        %1571 = vmatprep.subr.mxu0 0.0
        %1572 = vmatpush1.msra.mxu0 0.0
        %1573 = vmatprep.subr.mxu0 0.0
        %1574 = vmatpush1.msra.mxu0 0.0
        %1575 = vmatprep.subr.mxu0 0.0
        %1576 = vmatpush1.msra.mxu0 0.0
        %1577 = vmatprep.subr.mxu0 0.0
        %1578 = vmatpush1.msra.mxu0 0.0
        %1579 = vmatprep.subr.mxu0 0.0
        %1580 = vmatpush1.msra.mxu0 0.0
        %1581 = vmatprep.mubr.f32.mxu0 0.0
        %1582 = vmatmul.mubr.f32.gmra.mrb[0].mxu0 %v1515
        %v1583 = vpop.f32.mrb[0].mxu0
        %v1584 = vadd.f32 %v380, %v1583
        %v1585 = vpop.f32.mrb[0].mxu0
        %1586 = vdwg.mxu0
        %v1587 = vmax.f32 %v1584, 0.0
        %v1589 = vcombine.high %v1587, %v1587
        %v1591 = vunpack.c.l.s4 1966171168
        %v1592 = vunpack.c.0.s8 %v1591
        %v1593 = vlaneseq
        %v1594 = vshrl.u32 %v1593, 7
        %v1595 = vsub.s32 %v1592, %v1594
        %v1596 = vrot.slane %v1587, %v1595
        %v1598 = vunpack.c.l.s4 1966171168
        %v1599 = vunpack.c.0.s8 %v1598
        %v1600 = vlaneseq
        %v1601 = vshrl.u32 %v1600, 7
        %v1602 = vsub.s32 %v1599, %v1601
        %v1603 = vrot.slane %v1589, %v1602
        %v1604 = vcombine.high %v1596, %v1596
        %v1605 = vcombine.high %v1603, %v1603
        %v1607 = vunpack.c.l.s4 1966171168
        %v1608 = vunpack.c.0.s8 %v1607
        %v1609 = vlaneseq
        %v1610 = vshrl.u32 %v1609, 7
        %v1611 = vsub.s32 %v1608, %v1610
        %v1612 = vrot.slane %v1596, %v1611
        %v1614 = vunpack.c.l.s4 1966171168
        %v1615 = vunpack.c.0.s8 %v1614
        %v1616 = vlaneseq
        %v1617 = vshrl.u32 %v1616, 7
        %v1618 = vsub.s32 %v1615, %v1617
        %v1619 = vrot.slane %v1603, %v1618
        %v1621 = vunpack.c.l.s4 1966171168
        %v1622 = vunpack.c.0.s8 %v1621
        %v1623 = vlaneseq
        %v1624 = vshrl.u32 %v1623, 7
        %v1625 = vsub.s32 %v1622, %v1624
        %v1626 = vrot.slane %v1604, %v1625
        %v1628 = vunpack.c.l.s4 1966171168
        %v1629 = vunpack.c.0.s8 %v1628
        %v1630 = vlaneseq
        %v1631 = vshrl.u32 %v1630, 7
        %v1632 = vsub.s32 %v1629, %v1631
        %v1633 = vrot.slane %v1605, %v1632
        %v1634 = vcombine.high %v1612, %v1612
        %v1635 = vcombine.high %v1619, %v1619
        %v1636 = vcombine.high %v1626, %v1626
        %v1637 = vcombine.high %v1633, %v1633
        %1646 = vst.msk [vmem:[%s268 + $0x5] sm:$0x1] %vm515, %v1612
        %1647 = vst.msk [vmem:[%s268 + $0xd] sm:$0x1] %vm515, %v1626
        %1648 = vst.msk [vmem:[%s268 + $0x15] sm:$0x1] %vm515, %v1634
        %1649 = vst.msk [vmem:[%s268 + $0x1d] sm:$0x1] %vm515, %v1636
        %1650 = vst.msk [vmem:[%s268 + $0x25] sm:$0x1] %vm515, %v1619
        %1651 = vst.msk [vmem:[%s268 + $0x2d] sm:$0x1] %vm515, %v1633
        %1652 = vst.msk [vmem:[%s268 + $0x35] sm:$0x1] %vm515, %v1635
        %1653 = vst.msk [vmem:[%s268 + $0x3d] sm:$0x1] %vm515, %v1637
        %v1654 = vld [vmem:[%s236 + $0xc] sm:$0x1]
        %v1655 = vld [vmem:[%s236 + $0x1c] sm:$0x1]
        %v1656 = vld [vmem:[%s236 + $0x2c] sm:$0x1]
        %v1657 = vld [vmem:[%s236 + $0x3c] sm:$0x1]
        %v1662 = vrot.slane %v1655, 7
        %v1663 = vsel %vm292, %v1662, %v1654
        %v1664 = vrot.slane %v1656, 6
        %v1665 = vsel %vm295, %v1664, %v1663
        %v1666 = vrot.slane %v1657, 5
        %v1667 = vsel %vm298, %v1666, %v1665
        %v1668 = vsel %vm304, %v1667, 0
        %1670 = vmatprep.subr.mxu0 0.0
        %1671 = vmatpush1.msra.mxu0 %v1668
        %1672 = vmatprep.subr.mxu0 0.0
        %1673 = vmatpush1.msra.mxu0 0.0
        %1674 = vmatprep.subr.mxu0 0.0
        %1675 = vmatpush1.msra.mxu0 0.0
        %1676 = vmatprep.subr.mxu0 0.0
        %1677 = vmatpush1.msra.mxu0 0.0
        %1678 = vmatprep.subr.mxu0 0.0
        %1679 = vmatpush1.msra.mxu0 0.0
        %1680 = vmatprep.subr.mxu0 0.0
        %1681 = vmatpush1.msra.mxu0 0.0
        %1682 = vmatprep.subr.mxu0 0.0
        %1683 = vmatpush1.msra.mxu0 0.0
        %1684 = vmatprep.subr.mxu0 0.0
        %1685 = vmatpush1.msra.mxu0 0.0
        %1686 = vmatprep.subr.mxu0 0.0
        %1687 = vmatpush1.msra.mxu0 0.0
        %1688 = vmatprep.subr.mxu0 0.0
        %1689 = vmatpush1.msra.mxu0 0.0
        %1690 = vmatprep.subr.mxu0 0.0
        %1691 = vmatpush1.msra.mxu0 0.0
        %1692 = vmatprep.subr.mxu0 0.0
        %1693 = vmatpush1.msra.mxu0 0.0
        %1694 = vmatprep.subr.mxu0 0.0
        %1695 = vmatpush1.msra.mxu0 0.0
        %1696 = vmatprep.subr.mxu0 0.0
        %1697 = vmatpush1.msra.mxu0 0.0
        %1698 = vmatprep.subr.mxu0 0.0
        %1699 = vmatpush1.msra.mxu0 0.0
        %1700 = vmatprep.subr.mxu0 0.0
        %1701 = vmatpush1.msra.mxu0 0.0
        %1702 = vmatprep.subr.mxu0 0.0
        %1703 = vmatpush1.msra.mxu0 0.0
        %1704 = vmatprep.subr.mxu0 0.0
        %1705 = vmatpush1.msra.mxu0 0.0
        %1706 = vmatprep.subr.mxu0 0.0
        %1707 = vmatpush1.msra.mxu0 0.0
        %1708 = vmatprep.subr.mxu0 0.0
        %1709 = vmatpush1.msra.mxu0 0.0
        %1710 = vmatprep.subr.mxu0 0.0
        %1711 = vmatpush1.msra.mxu0 0.0
        %1712 = vmatprep.subr.mxu0 0.0
        %1713 = vmatpush1.msra.mxu0 0.0
        %1714 = vmatprep.subr.mxu0 0.0
        %1715 = vmatpush1.msra.mxu0 0.0
        %1716 = vmatprep.subr.mxu0 0.0
        %1717 = vmatpush1.msra.mxu0 0.0
        %1718 = vmatprep.subr.mxu0 0.0
        %1719 = vmatpush1.msra.mxu0 0.0
        %1720 = vmatprep.subr.mxu0 0.0
        %1721 = vmatpush1.msra.mxu0 0.0
        %1722 = vmatprep.subr.mxu0 0.0
        %1723 = vmatpush1.msra.mxu0 0.0
        %1724 = vmatprep.subr.mxu0 0.0
        %1725 = vmatpush1.msra.mxu0 0.0
        %1726 = vmatprep.subr.mxu0 0.0
        %1727 = vmatpush1.msra.mxu0 0.0
        %1728 = vmatprep.subr.mxu0 0.0
        %1729 = vmatpush1.msra.mxu0 0.0
        %1730 = vmatprep.subr.mxu0 0.0
        %1731 = vmatpush1.msra.mxu0 0.0
        %1732 = vmatprep.subr.mxu0 0.0
        %1733 = vmatpush1.msra.mxu0 0.0
        %1734 = vmatprep.mubr.f32.mxu0 0.0
        %1735 = vmatmul.mubr.f32.gmra.mrb[0].mxu0 %v302
        %v1736 = vpop.f32.mrb[0].mxu0
        %v1737 = vadd.f32 0.0, %v1736
        %v1738 = vpop.f32.mrb[0].mxu0
        %1739 = vdwg.mxu0
        %v1741 = vsel %vm382, %v1737, 0
        %1743 = vmatprep.subr.mxu0 0.0
        %1744 = vmatpush1.msra.mxu0 %v281
        %1745 = vmatprep.subr.mxu0 0.0
        %1746 = vmatpush1.msra.mxu0 %v282
        %1747 = vmatprep.subr.mxu0 0.0
        %1748 = vmatpush1.msra.mxu0 0.0
        %1749 = vmatprep.subr.mxu0 0.0
        %1750 = vmatpush1.msra.mxu0 0.0
        %1751 = vmatprep.subr.mxu0 0.0
        %1752 = vmatpush1.msra.mxu0 0.0
        %1753 = vmatprep.subr.mxu0 0.0
        %1754 = vmatpush1.msra.mxu0 0.0
        %1755 = vmatprep.subr.mxu0 0.0
        %1756 = vmatpush1.msra.mxu0 0.0
        %1757 = vmatprep.subr.mxu0 0.0
        %1758 = vmatpush1.msra.mxu0 0.0
        %1759 = vmatprep.subr.mxu0 0.0
        %1760 = vmatpush1.msra.mxu0 0.0
        %1761 = vmatprep.subr.mxu0 0.0
        %1762 = vmatpush1.msra.mxu0 0.0
        %1763 = vmatprep.subr.mxu0 0.0
        %1764 = vmatpush1.msra.mxu0 0.0
        %1765 = vmatprep.subr.mxu0 0.0
        %1766 = vmatpush1.msra.mxu0 0.0
        %1767 = vmatprep.subr.mxu0 0.0
        %1768 = vmatpush1.msra.mxu0 0.0
        %1769 = vmatprep.subr.mxu0 0.0
        %1770 = vmatpush1.msra.mxu0 0.0
        %1771 = vmatprep.subr.mxu0 0.0
        %1772 = vmatpush1.msra.mxu0 0.0
        %1773 = vmatprep.subr.mxu0 0.0
        %1774 = vmatpush1.msra.mxu0 0.0
        %1775 = vmatprep.subr.mxu0 0.0
        %1776 = vmatpush1.msra.mxu0 0.0
        %1777 = vmatprep.subr.mxu0 0.0
        %1778 = vmatpush1.msra.mxu0 0.0
        %1779 = vmatprep.subr.mxu0 0.0
        %1780 = vmatpush1.msra.mxu0 0.0
        %1781 = vmatprep.subr.mxu0 0.0
        %1782 = vmatpush1.msra.mxu0 0.0
        %1783 = vmatprep.subr.mxu0 0.0
        %1784 = vmatpush1.msra.mxu0 0.0
        %1785 = vmatprep.subr.mxu0 0.0
        %1786 = vmatpush1.msra.mxu0 0.0
        %1787 = vmatprep.subr.mxu0 0.0
        %1788 = vmatpush1.msra.mxu0 0.0
        %1789 = vmatprep.subr.mxu0 0.0
        %1790 = vmatpush1.msra.mxu0 0.0
        %1791 = vmatprep.subr.mxu0 0.0
        %1792 = vmatpush1.msra.mxu0 0.0
        %1793 = vmatprep.subr.mxu0 0.0
        %1794 = vmatpush1.msra.mxu0 0.0
        %1795 = vmatprep.subr.mxu0 0.0
        %1796 = vmatpush1.msra.mxu0 0.0
        %1797 = vmatprep.subr.mxu0 0.0
        %1798 = vmatpush1.msra.mxu0 0.0
        %1799 = vmatprep.subr.mxu0 0.0
        %1800 = vmatpush1.msra.mxu0 0.0
        %1801 = vmatprep.subr.mxu0 0.0
        %1802 = vmatpush1.msra.mxu0 0.0
        %1803 = vmatprep.subr.mxu0 0.0
        %1804 = vmatpush1.msra.mxu0 0.0
        %1805 = vmatprep.subr.mxu0 0.0
        %1806 = vmatpush1.msra.mxu0 0.0
        %1807 = vmatprep.mubr.f32.mxu0 0.0
        %1808 = vmatmul.mubr.f32.gmra.mrb[0].mxu0 %v1741
        %v1809 = vpop.f32.mrb[0].mxu0
        %v1810 = vadd.f32 %v380, %v1809
        %v1811 = vpop.f32.mrb[0].mxu0
        %1812 = vdwg.mxu0
        %v1813 = vmax.f32 %v1810, 0.0
        %v1815 = vcombine.high %v1813, %v1813
        %v1817 = vunpack.c.l.s4 1966171168
        %v1818 = vunpack.c.0.s8 %v1817
        %v1819 = vlaneseq
        %v1820 = vshrl.u32 %v1819, 7
        %v1821 = vsub.s32 %v1818, %v1820
        %v1822 = vrot.slane %v1813, %v1821
        %v1824 = vunpack.c.l.s4 1966171168
        %v1825 = vunpack.c.0.s8 %v1824
        %v1826 = vlaneseq
        %v1827 = vshrl.u32 %v1826, 7
        %v1828 = vsub.s32 %v1825, %v1827
        %v1829 = vrot.slane %v1815, %v1828
        %v1830 = vcombine.high %v1822, %v1822
        %v1831 = vcombine.high %v1829, %v1829
        %v1833 = vunpack.c.l.s4 1966171168
        %v1834 = vunpack.c.0.s8 %v1833
        %v1835 = vlaneseq
        %v1836 = vshrl.u32 %v1835, 7
        %v1837 = vsub.s32 %v1834, %v1836
        %v1838 = vrot.slane %v1822, %v1837
        %v1840 = vunpack.c.l.s4 1966171168
        %v1841 = vunpack.c.0.s8 %v1840
        %v1842 = vlaneseq
        %v1843 = vshrl.u32 %v1842, 7
        %v1844 = vsub.s32 %v1841, %v1843
        %v1845 = vrot.slane %v1829, %v1844
        %v1847 = vunpack.c.l.s4 1966171168
        %v1848 = vunpack.c.0.s8 %v1847
        %v1849 = vlaneseq
        %v1850 = vshrl.u32 %v1849, 7
        %v1851 = vsub.s32 %v1848, %v1850
        %v1852 = vrot.slane %v1830, %v1851
        %v1854 = vunpack.c.l.s4 1966171168
        %v1855 = vunpack.c.0.s8 %v1854
        %v1856 = vlaneseq
        %v1857 = vshrl.u32 %v1856, 7
        %v1858 = vsub.s32 %v1855, %v1857
        %v1859 = vrot.slane %v1831, %v1858
        %v1860 = vcombine.high %v1838, %v1838
        %v1861 = vcombine.high %v1845, %v1845
        %v1862 = vcombine.high %v1852, %v1852
        %v1863 = vcombine.high %v1859, %v1859
        %1872 = vst.msk [vmem:[%s268 + $0x6] sm:$0x1] %vm515, %v1838
        %1873 = vst.msk [vmem:[%s268 + $0xe] sm:$0x1] %vm515, %v1852
        %1874 = vst.msk [vmem:[%s268 + $0x16] sm:$0x1] %vm515, %v1860
        %1875 = vst.msk [vmem:[%s268 + $0x1e] sm:$0x1] %vm515, %v1862
        %1876 = vst.msk [vmem:[%s268 + $0x26] sm:$0x1] %vm515, %v1845
        %1877 = vst.msk [vmem:[%s268 + $0x2e] sm:$0x1] %vm515, %v1859
        %1878 = vst.msk [vmem:[%s268 + $0x36] sm:$0x1] %vm515, %v1861
        %1879 = vst.msk [vmem:[%s268 + $0x3e] sm:$0x1] %vm515, %v1863
        %v1880 = vld [vmem:[%s236 + $0xe] sm:$0x1]
        %v1881 = vld [vmem:[%s236 + $0x1e] sm:$0x1]
        %v1882 = vld [vmem:[%s236 + $0x2e] sm:$0x1]
        %v1883 = vld [vmem:[%s236 + $0x3e] sm:$0x1]
        %v1888 = vrot.slane %v1881, 7
        %v1889 = vsel %vm292, %v1888, %v1880
        %v1890 = vrot.slane %v1882, 6
        %v1891 = vsel %vm295, %v1890, %v1889
        %v1892 = vrot.slane %v1883, 5
        %v1893 = vsel %vm298, %v1892, %v1891
        %v1894 = vsel %vm304, %v1893, 0
        %1896 = vmatprep.subr.mxu0 0.0
        %1897 = vmatpush1.msra.mxu0 %v1894
        %1898 = vmatprep.subr.mxu0 0.0
        %1899 = vmatpush1.msra.mxu0 0.0
        %1900 = vmatprep.subr.mxu0 0.0
        %1901 = vmatpush1.msra.mxu0 0.0
        %1902 = vmatprep.subr.mxu0 0.0
        %1903 = vmatpush1.msra.mxu0 0.0
        %1904 = vmatprep.subr.mxu0 0.0
        %1905 = vmatpush1.msra.mxu0 0.0
        %1906 = vmatprep.subr.mxu0 0.0
        %1907 = vmatpush1.msra.mxu0 0.0
        %1908 = vmatprep.subr.mxu0 0.0
        %1909 = vmatpush1.msra.mxu0 0.0
        %1910 = vmatprep.subr.mxu0 0.0
        %1911 = vmatpush1.msra.mxu0 0.0
        %1912 = vmatprep.subr.mxu0 0.0
        %1913 = vmatpush1.msra.mxu0 0.0
        %1914 = vmatprep.subr.mxu0 0.0
        %1915 = vmatpush1.msra.mxu0 0.0
        %1916 = vmatprep.subr.mxu0 0.0
        %1917 = vmatpush1.msra.mxu0 0.0
        %1918 = vmatprep.subr.mxu0 0.0
        %1919 = vmatpush1.msra.mxu0 0.0
        %1920 = vmatprep.subr.mxu0 0.0
        %1921 = vmatpush1.msra.mxu0 0.0
        %1922 = vmatprep.subr.mxu0 0.0
        %1923 = vmatpush1.msra.mxu0 0.0
        %1924 = vmatprep.subr.mxu0 0.0
        %1925 = vmatpush1.msra.mxu0 0.0
        %1926 = vmatprep.subr.mxu0 0.0
        %1927 = vmatpush1.msra.mxu0 0.0
        %1928 = vmatprep.subr.mxu0 0.0
        %1929 = vmatpush1.msra.mxu0 0.0
        %1930 = vmatprep.subr.mxu0 0.0
        %1931 = vmatpush1.msra.mxu0 0.0
        %1932 = vmatprep.subr.mxu0 0.0
        %1933 = vmatpush1.msra.mxu0 0.0
        %1934 = vmatprep.subr.mxu0 0.0
        %1935 = vmatpush1.msra.mxu0 0.0
        %1936 = vmatprep.subr.mxu0 0.0
        %1937 = vmatpush1.msra.mxu0 0.0
        %1938 = vmatprep.subr.mxu0 0.0
        %1939 = vmatpush1.msra.mxu0 0.0
        %1940 = vmatprep.subr.mxu0 0.0
        %1941 = vmatpush1.msra.mxu0 0.0
        %1942 = vmatprep.subr.mxu0 0.0
        %1943 = vmatpush1.msra.mxu0 0.0
        %1944 = vmatprep.subr.mxu0 0.0
        %1945 = vmatpush1.msra.mxu0 0.0
        %1946 = vmatprep.subr.mxu0 0.0
        %1947 = vmatpush1.msra.mxu0 0.0
        %1948 = vmatprep.subr.mxu0 0.0
        %1949 = vmatpush1.msra.mxu0 0.0
        %1950 = vmatprep.subr.mxu0 0.0
        %1951 = vmatpush1.msra.mxu0 0.0
        %1952 = vmatprep.subr.mxu0 0.0
        %1953 = vmatpush1.msra.mxu0 0.0
        %1954 = vmatprep.subr.mxu0 0.0
        %1955 = vmatpush1.msra.mxu0 0.0
        %1956 = vmatprep.subr.mxu0 0.0
        %1957 = vmatpush1.msra.mxu0 0.0
        %1958 = vmatprep.subr.mxu0 0.0
        %1959 = vmatpush1.msra.mxu0 0.0
        %1960 = vmatprep.mubr.f32.mxu0 0.0
        %1961 = vmatmul.mubr.f32.gmra.mrb[0].mxu0 %v302
        %v1962 = vpop.f32.mrb[0].mxu0
        %v1963 = vadd.f32 0.0, %v1962
        %v1964 = vpop.f32.mrb[0].mxu0
        %1965 = vdwg.mxu0
        %v1967 = vsel %vm382, %v1963, 0
        %1969 = vmatprep.subr.mxu0 0.0
        %1970 = vmatpush1.msra.mxu0 %v281
        %1971 = vmatprep.subr.mxu0 0.0
        %1972 = vmatpush1.msra.mxu0 %v282
        %1973 = vmatprep.subr.mxu0 0.0
        %1974 = vmatpush1.msra.mxu0 0.0
        %1975 = vmatprep.subr.mxu0 0.0
        %1976 = vmatpush1.msra.mxu0 0.0
        %1977 = vmatprep.subr.mxu0 0.0
        %1978 = vmatpush1.msra.mxu0 0.0
        %1979 = vmatprep.subr.mxu0 0.0
        %1980 = vmatpush1.msra.mxu0 0.0
        %1981 = vmatprep.subr.mxu0 0.0
        %1982 = vmatpush1.msra.mxu0 0.0
        %1983 = vmatprep.subr.mxu0 0.0
        %1984 = vmatpush1.msra.mxu0 0.0
        %1985 = vmatprep.subr.mxu0 0.0
        %1986 = vmatpush1.msra.mxu0 0.0
        %1987 = vmatprep.subr.mxu0 0.0
        %1988 = vmatpush1.msra.mxu0 0.0
        %1989 = vmatprep.subr.mxu0 0.0
        %1990 = vmatpush1.msra.mxu0 0.0
        %1991 = vmatprep.subr.mxu0 0.0
        %1992 = vmatpush1.msra.mxu0 0.0
        %1993 = vmatprep.subr.mxu0 0.0
        %1994 = vmatpush1.msra.mxu0 0.0
        %1995 = vmatprep.subr.mxu0 0.0
        %1996 = vmatpush1.msra.mxu0 0.0
        %1997 = vmatprep.subr.mxu0 0.0
        %1998 = vmatpush1.msra.mxu0 0.0
        %1999 = vmatprep.subr.mxu0 0.0
        %2000 = vmatpush1.msra.mxu0 0.0
        %2001 = vmatprep.subr.mxu0 0.0
        %2002 = vmatpush1.msra.mxu0 0.0
        %2003 = vmatprep.subr.mxu0 0.0
        %2004 = vmatpush1.msra.mxu0 0.0
        %2005 = vmatprep.subr.mxu0 0.0
        %2006 = vmatpush1.msra.mxu0 0.0
        %2007 = vmatprep.subr.mxu0 0.0
        %2008 = vmatpush1.msra.mxu0 0.0
        %2009 = vmatprep.subr.mxu0 0.0
        %2010 = vmatpush1.msra.mxu0 0.0
        %2011 = vmatprep.subr.mxu0 0.0
        %2012 = vmatpush1.msra.mxu0 0.0
        %2013 = vmatprep.subr.mxu0 0.0
        %2014 = vmatpush1.msra.mxu0 0.0
        %2015 = vmatprep.subr.mxu0 0.0
        %2016 = vmatpush1.msra.mxu0 0.0
        %2017 = vmatprep.subr.mxu0 0.0
        %2018 = vmatpush1.msra.mxu0 0.0
        %2019 = vmatprep.subr.mxu0 0.0
        %2020 = vmatpush1.msra.mxu0 0.0
        %2021 = vmatprep.subr.mxu0 0.0
        %2022 = vmatpush1.msra.mxu0 0.0
        %2023 = vmatprep.subr.mxu0 0.0
        %2024 = vmatpush1.msra.mxu0 0.0
        %2025 = vmatprep.subr.mxu0 0.0
        %2026 = vmatpush1.msra.mxu0 0.0
        %2027 = vmatprep.subr.mxu0 0.0
        %2028 = vmatpush1.msra.mxu0 0.0
        %2029 = vmatprep.subr.mxu0 0.0
        %2030 = vmatpush1.msra.mxu0 0.0
        %2031 = vmatprep.subr.mxu0 0.0
        %2032 = vmatpush1.msra.mxu0 0.0
        %2033 = vmatprep.mubr.f32.mxu0 0.0
        %2034 = vmatmul.mubr.f32.gmra.mrb[0].mxu0 %v1967
        %v2035 = vpop.f32.mrb[0].mxu0
        %v2036 = vadd.f32 %v380, %v2035
        %v2037 = vpop.f32.mrb[0].mxu0
        %2038 = vdwg.mxu0
        %v2039 = vmax.f32 %v2036, 0.0
        %v2041 = vcombine.high %v2039, %v2039
        %v2043 = vunpack.c.l.s4 1966171168
        %v2044 = vunpack.c.0.s8 %v2043
        %v2045 = vlaneseq
        %v2046 = vshrl.u32 %v2045, 7
        %v2047 = vsub.s32 %v2044, %v2046
        %v2048 = vrot.slane %v2039, %v2047
        %v2050 = vunpack.c.l.s4 1966171168
        %v2051 = vunpack.c.0.s8 %v2050
        %v2052 = vlaneseq
        %v2053 = vshrl.u32 %v2052, 7
        %v2054 = vsub.s32 %v2051, %v2053
        %v2055 = vrot.slane %v2041, %v2054
        %v2056 = vcombine.high %v2048, %v2048
        %v2057 = vcombine.high %v2055, %v2055
        %v2059 = vunpack.c.l.s4 1966171168
        %v2060 = vunpack.c.0.s8 %v2059
        %v2061 = vlaneseq
        %v2062 = vshrl.u32 %v2061, 7
        %v2063 = vsub.s32 %v2060, %v2062
        %v2064 = vrot.slane %v2048, %v2063
        %v2066 = vunpack.c.l.s4 1966171168
        %v2067 = vunpack.c.0.s8 %v2066
        %v2068 = vlaneseq
        %v2069 = vshrl.u32 %v2068, 7
        %v2070 = vsub.s32 %v2067, %v2069
        %v2071 = vrot.slane %v2055, %v2070
        %v2073 = vunpack.c.l.s4 1966171168
        %v2074 = vunpack.c.0.s8 %v2073
        %v2075 = vlaneseq
        %v2076 = vshrl.u32 %v2075, 7
        %v2077 = vsub.s32 %v2074, %v2076
        %v2078 = vrot.slane %v2056, %v2077
        %v2080 = vunpack.c.l.s4 1966171168
        %v2081 = vunpack.c.0.s8 %v2080
        %v2082 = vlaneseq
        %v2083 = vshrl.u32 %v2082, 7
        %v2084 = vsub.s32 %v2081, %v2083
        %v2085 = vrot.slane %v2057, %v2084
        %v2086 = vcombine.high %v2064, %v2064
        %v2087 = vcombine.high %v2071, %v2071
        %v2088 = vcombine.high %v2078, %v2078
        %v2089 = vcombine.high %v2085, %v2085
        %2098 = vst.msk [vmem:[%s268 + $0x7] sm:$0x1] %vm515, %v2064
        %2099 = vst.msk [vmem:[%s268 + $0xf] sm:$0x1] %vm515, %v2078
        %2100 = vst.msk [vmem:[%s268 + $0x17] sm:$0x1] %vm515, %v2086
        %2101 = vst.msk [vmem:[%s268 + $0x1f] sm:$0x1] %vm515, %v2088
        %2102 = vst.msk [vmem:[%s268 + $0x27] sm:$0x1] %vm515, %v2071
        %2103 = vst.msk [vmem:[%s268 + $0x2f] sm:$0x1] %vm515, %v2085
        %2104 = vst.msk [vmem:[%s268 + $0x37] sm:$0x1] %vm515, %v2087
        %2105 = vst.msk [vmem:[%s268 + $0x3f] sm:$0x1] %vm515, %v2089
        %s2106 = sand.u32 %s153, 1
        %s2107 = scalar_lea.sflag [#allocation4], %s2106
        %s2108 = sand.u32 %s153, 1
        %s2109 = smul.addr %s2108, 64
        %s2110 = scalar_lea.vmem [#allocation5], %s2109
        // Predicated region
        $region41: #{tpu_custom_call.1} parent=35 // pred_check
          %p2111 = pneg %p163
        $region42: #{tpu_custom_call.1} parent=35 // pred_check_branch
          %2113 = sbr.rel (%p2111) target = $region44
        $region43: #{tpu_custom_call.1} parent=35 // pred_region
          %s2114 = smul.u32 8, %s28
          %s2116 = ssub.s32 1024, 1024
          %2117 = vsyncadd %s2107, %s2116
          %s2118 = sadd.s32 %s27, %s2114
          %s2119 = smul.addr %s26, 8
          %s2120 = sadd.s32 %s2118, %s2119
          %s2121 = smul.addr %s2120, 128
          %s2122 = scalar_lea.hbm %s4, %s2121
          %s2123 = sshll.u32 %s2110, 4
          %s2124 = int_to_ptr.vmem [resolvable:$true] %s2123
          %2129 = dma.vmem_to_hbm [thread:$0]  %s2124, 1024, %s2122, %s2107, 128, 128, 8
        $region44: #{tpu_custom_call.1} parent=35 // pred_fallthru
          _
      $region36: #{tpu_custom_call.1} parent=5 // pred_fallthru
        _
      %p2130 = scmp.le.s32.totalorder 2, %s16
      // Predicated region
      $region45: #{tpu_custom_call.1} parent=5 // pred_check
        %p2131 = pneg %p2130
      $region46: #{tpu_custom_call.1} parent=5 // pred_check_branch
        %2133 = sbr.rel (%p2131) target = $region48
      $region47: #{tpu_custom_call.1} parent=5 // pred_region
        %s2134 = ssub.s32 %s16, 2
        // Predicated region
        $region49: #{tpu_custom_call.1} parent=47 // pred_check
          %p2135 = pneg %p169
        $region50: #{tpu_custom_call.1} parent=47 // pred_check_branch
          %2137 = sbr.rel (%p2135) target = $region52
        $region51: #{tpu_custom_call.1} parent=47 // pred_region
          %s2138 = sand.u32 %s154, 1
          %s2139 = scalar_lea.sflag [#allocation4], %s2138
          %s2140 = sand.u32 %s154, 1
          %s2141 = smul.addr %s2140, 64
          %s2142 = scalar_lea.vmem [#allocation5], %s2141
          %2143 = dma.done %s2139, 1024
        $region52: #{tpu_custom_call.1} parent=47 // pred_fallthru
          _
      $region48: #{tpu_custom_call.1} parent=5 // pred_fallthru
        _
    $region6: #{tpu_custom_call.1} parent=1 // loop_footer
      %s20 = sadd.s32 1, %s16
    $region7: #{tpu_custom_call.1} parent=1 // loop_footer_branch
      %15 = sbr.rel target = $region3
    $region8: #{tpu_custom_call.1} parent=1 // loop_exit
      _
    %2144 = vsyncpa [#allocation3], 1
    %s2145 = scalar_lea.sflag [#allocation3], 1
    %2146 = vsyncpa %s2145, 1
    %2147 = vsyncpa [#allocation4], 1
    %s2148 = scalar_lea.sflag [#allocation4], 1
    %2149 = vsyncpa %s2148, 1

</llo_original>
